<compile_context>
chip_gen: v6e
topology: v6e:2x2x1
jax: 0.10.0
libtpu: 0.0.40
codegen_flags: <defaults>
</compile_context>

<pallas_src>
import functools
import math

import jax
import jax.numpy as jnp
from jax import lax
from jax.experimental import pallas as pl
from jax.experimental.pallas import tpu as pltpu


# =============================================================================
# Kernel 1: fused stack of DecoderLayers (grid = (row_blocks, n_layers))
# =============================================================================
def fused_layers_kernel(x0_ref, maskb_ref,
                        wqkv_ref, bqkv_ref, wc_ref, bc_ref,
                        w1_ref, b1_ref, w2_ref, b2_ref,
                        gamma_ref, beta_ref,
                        out_ref,
                        h_ref,
                        *, L, n_head, n_layers, eps):
    layer = pl.program_id(1)
    rows, D = h_ref.shape
    B_blk = rows // L
    H = n_head
    dh = D // H

    @pl.when(layer == 0)
    def _init():
        h_ref[...] = x0_ref[...]

    x = h_ref[...]                                            # (rows, D) f32, VMEM-resident
    xb = x.astype(jnp.bfloat16)

    # ---- fused Q|K|V projection: ONE dense (rows, D) @ (D, 3D) matmul ----
    # (1/sqrt(dh) already folded into the Q weight columns / bias on the host)
    qkv = jnp.dot(xb, wqkv_ref[...], preferred_element_type=jnp.float32) + bqkv_ref[...]
    qkv_b = qkv.astype(jnp.bfloat16)

    # lane-slice each head and stack -> (H * B_blk, L, dh); leading-dim reshapes only
    def head_stack(col0):
        parts = [qkv_b[:, col0 + h * dh: col0 + (h + 1) * dh] for h in range(H)]
        return jnp.stack(parts, axis=0).reshape(H * B_blk, L, dh)

    qh = head_stack(0)
    kh = head_stack(D)
    vh = head_stack(2 * D)

    # ---- scores + masked softmax, batched over (head, batch) ----
    s = jnp.einsum("nqd,nkd->nqk", qh, kh,
                   preferred_element_type=jnp.float32)        # (H*B_blk, L, L) f32
    s = s.reshape(H, B_blk, L, L) + maskb_ref[...][None]      # additive 0 / -10000 bias
    s = s - jnp.max(s, axis=-1, keepdims=True)
    e = jnp.exp(s)
    # approx reciprocal uses the EUP slot; the final log_softmax uses exact log-sum-exp.
    p = e * pl.reciprocal(jnp.sum(e, axis=-1, keepdims=True), approx=True)
    p = p.reshape(H * B_blk, L, L).astype(jnp.bfloat16)

    ctx = jnp.einsum("nqk,nkd->nqd", p, vh,
                     preferred_element_type=jnp.float32)      # (H*B_blk, L, dh)

    # concat heads back onto the lane axis -> (rows, D), then ONE (rows,D)@(D,D) projection
    ctx = ctx.reshape(H, rows, dh)
    ctx_flat = jnp.concatenate([ctx[h] for h in range(H)], axis=-1).astype(jnp.bfloat16)
    attn = jnp.dot(ctx_flat, wc_ref[...], preferred_element_type=jnp.float32) + bc_ref[...]

    # ---- position-wise FFN (dropout = identity at inference) ----
    h1 = jnp.maximum(
        jnp.dot(attn.astype(jnp.bfloat16), w1_ref[...],
                preferred_element_type=jnp.float32) + b1_ref[...], 0.0)
    ffn = jnp.dot(h1.astype(jnp.bfloat16), w2_ref[...],
                  preferred_element_type=jnp.float32) + b2_ref[...]

    # ---- residual + LayerNorm (biased variance, eps inside sqrt, rsqrt on the EUP) ----
    y = ffn + x
    mean = jnp.mean(y, axis=-1, keepdims=True)
    yc = y - mean
    var = jnp.mean(yc * yc, axis=-1, keepdims=True)
    y = gamma_ref[...] * (yc * lax.rsqrt(var + eps)) + beta_ref[...]

    h_ref[...] = y                                            # carried to the next layer

    @pl.when(layer == n_layers - 1)
    def _final():
        # Decoder: output projection input is (trg_after_layers + original trg)
        out_ref[...] = y + x0_ref[...]


# =============================================================================
# Kernels 2a/2b: vocab-tiled output projection + log_softmax (two-pass logsumexp)
# =============================================================================
def lse_kernel(final_ref, w_ref, b_ref, lse_ref, m_sc, l_sc):
    j = pl.program_id(0)

    @pl.when(j == 0)
    def _init():
        m_sc[...] = jnp.full_like(m_sc, -1e30)
        l_sc[...] = jnp.zeros_like(l_sc)

    logits = jnp.dot(final_ref[...].astype(jnp.bfloat16), w_ref[...],
                     preferred_element_type=jnp.float32) + b_ref[...]   # (BL, tile_v)
    m_new = jnp.maximum(m_sc[...], jnp.max(logits, axis=-1, keepdims=True))
    l_sc[...] = (l_sc[...] * jnp.exp(m_sc[...] - m_new)
                 + jnp.sum(jnp.exp(logits - m_new), axis=-1, keepdims=True))
    m_sc[...] = m_new

    @pl.when(j == pl.num_programs(0) - 1)
    def _finish():
        lse_ref[...] = m_sc[...] + jnp.log(l_sc[...])


def logprob_kernel(final_ref, lse_ref, w_ref, b_ref, out_ref):
    logits = jnp.dot(final_ref[...].astype(jnp.bfloat16), w_ref[...],
                     preferred_element_type=jnp.float32) + b_ref[...]
    out_ref[...] = logits - lse_ref[...]


# =============================================================================
# Host-side parameter preparation: stack layers, fold the attention scale,
# fuse Q|K|V, cast matmul weights to bf16, pad the vocab to a lane-dense tile.
# =============================================================================
def prepare_kernel_params(params, n_head, vocab_tile=512, weight_dtype=jnp.bfloat16):
    d_model = params["layers"][0]["wq"].shape[0]
    dh = d_model // n_head
    inv_sqrt = 1.0 / math.sqrt(dh)

    wqkv, bqkv, wc, bc, w1, b1, w2, b2, gamma, beta = ([] for _ in range(10))
    for lp in params["layers"]:
        wqkv.append(jnp.concatenate([lp["wq"] * inv_sqrt, lp["wk"], lp["wv"]], axis=1))
        bqkv.append(jnp.concatenate([lp["bq"] * inv_sqrt, lp["bk"], lp["bv"]], axis=1))
        wc.append(lp["wc"]); bc.append(lp["bc"])
        w1.append(lp["w1"]); b1.append(lp["b1"])
        w2.append(lp["w2"]); b2.append(lp["b2"])
        gamma.append(lp["gamma"]); beta.append(lp["beta"])

    V = params["w_out"].shape[1]
    Vp = ((V + 127) // 128) * 128
    if Vp <= vocab_tile:
        tile_v = Vp
    else:
        tile_v = vocab_tile
        Vp = ((V + tile_v - 1) // tile_v) * tile_v
    w_out = jnp.zeros((d_model, Vp), jnp.float32).at[:, :V].set(params["w_out"])
    b_out = jnp.full((1, Vp), -1e30, jnp.float32).at[:, :V].set(params["b_out"])

    wd = weight_dtype
    f32 = jnp.float32
    return dict(
        wqkv=jnp.stack(wqkv).astype(wd), bqkv=jnp.stack(bqkv).astype(f32),
        wc=jnp.stack(wc).astype(wd), bc=jnp.stack(bc).astype(f32),
        w1=jnp.stack(w1).astype(wd), b1=jnp.stack(b1).astype(f32),
        w2=jnp.stack(w2).astype(wd), b2=jnp.stack(b2).astype(f32),
        gamma=jnp.stack(gamma).astype(f32), beta=jnp.stack(beta).astype(f32),
        w_out=w_out.astype(wd), b_out=b_out,
        vocab=V, tile_v=tile_v,
    )


def _vmem_limit(est_bytes):
    # clamp to a range valid on all generations (v7x has 64 MiB of VMEM per TensorCore)
    return int(min(max(est_bytes, 16 * 1024 * 1024), 64 * 1024 * 1024))


# =============================================================================
# Wrapper: fused layer-stack call + vocab-tiled output-head calls
# =============================================================================
def decoder_forward(trg, trg_mask, params, n_head, eps=1e-12, row_blocks=1, vocab_tile=512):
    """trg: [B, L, D]; trg_mask: [B, 1, L, L] or [B, L, L] (1 = attend, 0 = masked)."""
    kp = prepare_kernel_params(params, n_head, vocab_tile=vocab_tile)

    B, L, D = trg.shape
    n_layers = kp["wqkv"].shape[0]
    F = kp["w1"].shape[2]
    Vp = kp["w_out"].shape[1]
    V, tile_v = kp["vocab"], kp["tile_v"]
    H = n_head

    assert B % row_blocks == 0, "row_blocks must divide the batch"
    B_blk = B // row_blocks
    rows_blk = B_blk * L

    # additive attention-mask bias (0 = attend, -10000 = masked), stored compactly in bf16
    mask = trg_mask[:, 0] if trg_mask.ndim == 4 else trg_mask
    maskb = jnp.where(mask == 0, -10000.0, 0.0).astype(jnp.bfloat16)       # (B, L, L)

    x0 = trg.reshape(B * L, D).astype(jnp.float32)

    kernel = functools.partial(fused_layers_kernel, L=L, n_head=n_head,
                               n_layers=n_layers, eps=eps)

    def layer_spec(arr):
        nz = arr.ndim - 1
        return pl.BlockSpec((None,) + tuple(arr.shape[1:]),
                            lambda r, l, nz=nz: (l,) + (0,) * nz)

    in_specs = [
        pl.BlockSpec((rows_blk, D), lambda r, l: (r, 0)),        # trg rows (row block)
        pl.BlockSpec((B_blk, L, L), lambda r, l: (r, 0, 0)),     # additive mask bias
        layer_spec(kp["wqkv"]), layer_spec(kp["bqkv"]),
        layer_spec(kp["wc"]), layer_spec(kp["bc"]),
        layer_spec(kp["w1"]), layer_spec(kp["b1"]),
        layer_spec(kp["w2"]), layer_spec(kp["b2"]),
        layer_spec(kp["gamma"]), layer_spec(kp["beta"]),
    ]

    # VMEM budget: 2x per-layer weight block (double buffered) + row-block activations/temps.
    per_layer_w = sum(int(kp[k].size // n_layers) * kp[k].dtype.itemsize
                      for k in ("wqkv", "bqkv", "wc", "bc", "w1", "b1", "w2", "b2",
                                "gamma", "beta"))
    temps = 4 * (rows_blk * 3 * D + 3 * H * B_blk * L * L + rows_blk * F + 5 * rows_blk * D)
    est1 = (2 * per_layer_w
            + 2 * (rows_blk * D * 4 + B_blk * L * L * 2)         # x0 + mask blocks
            + 3 * rows_blk * D * 4                               # out block (x2) + h scratch
            + temps)
    vmem1 = _vmem_limit(est1 * 3 // 2)

    final = pl.pallas_call(
        kernel,
        out_shape=jax.ShapeDtypeStruct((B * L, D), jnp.float32),
        grid=(row_blocks, n_layers),
        in_specs=in_specs,
        out_specs=pl.BlockSpec((rows_blk, D), lambda r, l: (r, 0)),
        scratch_shapes=[pltpu.VMEM((rows_blk, D), jnp.float32)],  # activation carried over layers
        compiler_params=pltpu.CompilerParams(
            dimension_semantics=("parallel", "arbitrary"),
            vmem_limit_bytes=vmem1),
    )(x0, maskb, kp["wqkv"], kp["bqkv"], kp["wc"], kp["bc"],
      kp["w1"], kp["b1"], kp["w2"], kp["b2"], kp["gamma"], kp["beta"])

    # ---- output head: vocab-tiled projection + log_softmax (two-pass logsumexp) ----
    BL = B * L
    n_vt = Vp // tile_v
    est2 = (2 * (BL * D * 4 + D * tile_v * 2 + tile_v * 4 + BL * tile_v * 4)
            + 4 * BL * 4 + 2 * BL * tile_v * 4)
    vmem2 = _vmem_limit(est2 * 3 // 2)

    final_spec = pl.BlockSpec((BL, D), lambda j: (0, 0))
    w_spec = pl.BlockSpec((D, tile_v), lambda j: (0, j))
    b_spec = pl.BlockSpec((1, tile_v), lambda j: (0, j))

    lse = pl.pallas_call(
        lse_kernel,
        out_shape=jax.ShapeDtypeStruct((BL, 1), jnp.float32),
        grid=(n_vt,),
        in_specs=[final_spec, w_spec, b_spec],
        out_specs=pl.BlockSpec((BL, 1), lambda j: (0, 0)),
        scratch_shapes=[pltpu.VMEM((BL, 1), jnp.float32),
                        pltpu.VMEM((BL, 1), jnp.float32)],
        compiler_params=pltpu.CompilerParams(dimension_semantics=("arbitrary",),
                                             vmem_limit_bytes=vmem2),
    )(final, kp["w_out"], kp["b_out"])

    logp = pl.pallas_call(
        logprob_kernel,
        out_shape=jax.ShapeDtypeStruct((BL, Vp), jnp.float32),
        grid=(n_vt,),
        in_specs=[final_spec, pl.BlockSpec((BL, 1), lambda j: (0, 0)), w_spec, b_spec],
        out_specs=pl.BlockSpec((BL, tile_v), lambda j: (0, j)),
        compiler_params=pltpu.CompilerParams(dimension_semantics=("parallel",),
                                             vmem_limit_bytes=vmem2),
    )(final, lse, kp["w_out"], kp["b_out"])

    return logp.reshape(B, L, Vp)[..., :V]                     # drop vocab padding


# =============================================================================
# Pure-JAX reference (mirrors the PyTorch module) for validation.
# Weights are rounded through bf16 so the comparison isolates kernel math.
# =============================================================================
def reference_decoder(trg, trg_mask, params, n_head, eps=1e-12, weight_dtype=jnp.bfloat16):
    def wc_(w):
        return w.astype(weight_dtype).astype(jnp.float32)

    mask = trg_mask[:, 0] if trg_mask.ndim == 4 else trg_mask
    B, L, D = trg.shape
    dh = D // n_head
    x = trg
    for lp in params["layers"]:
        q = x @ wc_(lp["wq"]) + lp["bq"]
        k = x @ wc_(lp["wk"]) + lp["bk"]
        v = x @ wc_(lp["wv"]) + lp["bv"]

        def split(t):
            return t.reshape(B, L, n_head, dh).transpose(0, 2, 1, 3)

        qh, kh, vh = split(q), split(k), split(v)
        s = qh @ kh.transpose(0, 1, 3, 2) / math.sqrt(dh)
        s = jnp.where(mask[:, None, :, :] == 0, -10000.0, s)
        a = jax.nn.softmax(s, axis=-1)
        ctx = (a @ vh).transpose(0, 2, 1, 3).reshape(B, L, D)
        attn = ctx @ wc_(lp["wc"]) + lp["bc"]
        h1 = jnp.maximum(attn @ wc_(lp["w1"]) + lp["b1"], 0.0)
        ffn = h1 @ wc_(lp["w2"]) + lp["b2"]
        y = ffn + x
        mean = y.mean(-1, keepdims=True)
        var = ((y - mean) ** 2).mean(-1, keepdims=True)
        x = lp["gamma"] * ((y - mean) / jnp.sqrt(var + eps)) + lp["beta"]
    logits = (x + trg) @ wc_(params["w_out"]) + params["b_out"]
    return jax.nn.log_softmax(logits, axis=-1)


# =============================================================================
# Deterministic parameter init (PyTorch nn.Linear-style uniform bounds)
# =============================================================================
def init_linear(key, fan_in, fan_out):
    k1, k2 = jax.random.split(key)
    bound = 1.0 / math.sqrt(fan_in)
    w = jax.random.uniform(k1, (fan_in, fan_out), jnp.float32, -bound, bound)
    b = jax.random.uniform(k2, (1, fan_out), jnp.float32, -bound, bound)
    return w, b


def init_decoder_params(key, d_model, ffn_hidden, n_layers, dec_voc_size):
    layers = []
    for _ in range(n_layers):
        keys = jax.random.split(key, 8)
        key = keys[0]
        wq, bq = init_linear(keys[1], d_model, d_model)
        wk, bk = init_linear(keys[2], d_model, d_model)
        wv, bv = init_linear(keys[3], d_model, d_model)
        wc, bc = init_linear(keys[4], d_model, d_model)
        w1, b1 = init_linear(keys[5], d_model, ffn_hidden)
        w2, b2 = init_linear(keys[6], ffn_hidden, d_model)
        layers.append(dict(wq=wq, bq=bq, wk=wk, bk=bk, wv=wv, bv=bv, wc=wc, bc=bc,
                           w1=w1, b1=b1, w2=w2, b2=b2,
                           gamma=jnp.ones((1, d_model), jnp.float32),
                           beta=jnp.zeros((1, d_model), jnp.float32)))
    key, ko = jax.random.split(key)
    w_out, b_out = init_linear(ko, d_model, dec_voc_size)
    return dict(layers=layers, w_out=w_out, b_out=b_out)


# =============================================================================
if __name__ == "__main__":
    B, L = 2, 8
    d_model, ffn_hidden, n_head, n_layers = 32, 64, 4, 2
    dec_voc_size = 50

    root = jax.random.PRNGKey(0)
    k_param, k_trg = jax.random.split(root)
    params = init_decoder_params(k_param, d_model, ffn_hidden, n_layers, dec_voc_size)

    trg = jax.random.normal(k_trg, (B, L, d_model), jnp.float32)
    # causal target mask [B, 1, L, L]; 1 = attend, 0 = masked
    causal = jnp.tril(jnp.ones((L, L), jnp.int32))
    trg_mask = jnp.broadcast_to(causal[None, None, :, :], (B, 1, L, L))

    # row_blocks=2 splits the batch into two independent row blocks (2 TensorCores on v7x).
    out = decoder_forward(trg, trg_mask, params, n_head, row_blocks=2)
    out = jax.block_until_ready(out)

    assert out.shape == (B, L, dec_voc_size)
    assert bool(jnp.all(jnp.isfinite(out)))
    # log_softmax rows should exponentiate-sum to ~1 (lse computed with exact two-pass logsumexp)
    row_sums = jnp.exp(out).sum(-1)
    assert bool(jnp.all(jnp.abs(row_sums - 1.0) < 2e-3))
    # bf16 matmul inputs + approx reciprocal in the attention softmax => relaxed tolerance
    ref = reference_decoder(trg, trg_mask, params, n_head)
    max_err = float(jnp.max(jnp.abs(out - ref)))
    assert max_err < 1e-1, f"kernel/reference mismatch: {max_err}"
    print("KERNEL_OK")
</pallas_src>

<mosaic_0001>
module attributes {stable_mosaic.version = 11 : i64} {
  func.func @fused_layers_kernel(%arg0: i32, %arg1: i32, %arg2: memref<8x32xf32, #tpu.memory_space<vmem>>, %arg3: memref<1x8x8xbf16, #tpu.memory_space<vmem>>, %arg4: memref<1x32x96xbf16, #tpu.memory_space<vmem>>, %arg5: memref<1x1x96xf32, #tpu.memory_space<vmem>>, %arg6: memref<1x32x32xbf16, #tpu.memory_space<vmem>>, %arg7: memref<1x1x32xf32, #tpu.memory_space<vmem>>, %arg8: memref<1x32x64xbf16, #tpu.memory_space<vmem>>, %arg9: memref<1x1x64xf32, #tpu.memory_space<vmem>>, %arg10: memref<1x64x32xbf16, #tpu.memory_space<vmem>>, %arg11: memref<1x1x32xf32, #tpu.memory_space<vmem>>, %arg12: memref<1x1x32xf32, #tpu.memory_space<vmem>>, %arg13: memref<1x1x32xf32, #tpu.memory_space<vmem>>, %arg14: memref<8x32xf32, #tpu.memory_space<vmem>>, %arg15: memref<8x32xf32, #tpu.memory_space<vmem>>) attributes {dimension_semantics = [#tpu.dimension_semantics<parallel>, #tpu.dimension_semantics<arbitrary>], iteration_bounds = array<i64: 2, 2>, scalar_prefetch = 0 : i64, scratch_operands = 1 : i64, tpu.core_type = #tpu.core_type<tc>, window_params = [{transform_indices = @transform_0, window_bounds = array<i64: 8, 32>}, {transform_indices = @transform_1, window_bounds = array<i64: 1, 8, 8>}, {transform_indices = @transform_2, window_bounds = array<i64: 1, 32, 96>}, {transform_indices = @transform_3, window_bounds = array<i64: 1, 1, 96>}, {transform_indices = @transform_4, window_bounds = array<i64: 1, 32, 32>}, {transform_indices = @transform_5, window_bounds = array<i64: 1, 1, 32>}, {transform_indices = @transform_6, window_bounds = array<i64: 1, 32, 64>}, {transform_indices = @transform_7, window_bounds = array<i64: 1, 1, 64>}, {transform_indices = @transform_8, window_bounds = array<i64: 1, 64, 32>}, {transform_indices = @transform_9, window_bounds = array<i64: 1, 1, 32>}, {transform_indices = @transform_10, window_bounds = array<i64: 1, 1, 32>}, {transform_indices = @transform_11, window_bounds = array<i64: 1, 1, 32>}, {transform_indices = @transform_12, window_bounds = array<i64: 8, 32>}]} {
    %c0_i32 = arith.constant 0 : i32
    %0 = arith.cmpi eq, %arg1, %c0_i32 : i32
    %1 = arith.extui %0 : i1 to i32
    %c0_i32_0 = arith.constant 0 : i32
    %2 = arith.cmpi ne, %1, %c0_i32_0 : i32
    scf.if %2 {
      %c0_51 = arith.constant 0 : index
      %c0_52 = arith.constant 0 : index
      %124 = vector.load %arg2[%c0_51, %c0_52] : memref<8x32xf32, #tpu.memory_space<vmem>>, vector<8x32xf32>
      %c0_53 = arith.constant 0 : index
      %c0_54 = arith.constant 0 : index
      %125 = vector.load %arg15[%c0_53, %c0_54] : memref<8x32xf32, #tpu.memory_space<vmem>>, vector<8x32xf32>
      tpu.vector_store %arg15[%c0_53, %c0_54], %124 {strides = array<i32>} : memref<8x32xf32, #tpu.memory_space<vmem>>, vector<8x32xf32>,
    } else {
    }
    %c0 = arith.constant 0 : index
    %c0_1 = arith.constant 0 : index
    %3 = vector.load %arg15[%c0, %c0_1] : memref<8x32xf32, #tpu.memory_space<vmem>>, vector<8x32xf32>
    %4 = arith.truncf %3 : vector<8x32xf32> to vector<8x32xbf16>
    %c0_2 = arith.constant 0 : index
    %c0_3 = arith.constant 0 : index
    %c0_4 = arith.constant 0 : index
    %5 = vector.load %arg4[%c0_2, %c0_3, %c0_4] : memref<1x32x96xbf16, #tpu.memory_space<vmem>>, vector<1x32x96xbf16>
    %6 = vector.shape_cast %5 : vector<1x32x96xbf16> to vector<32x96xbf16>
    %cst = arith.constant dense<0.000000e+00> : vector<8x96xf32>
    %7 = tpu.matmul %4, %6, %cst {dimension_numbers = #tpu.dot_dimension_numbers<[1], [0], [0], [1], [0, 0, 1, 1], [], []>} : vector<8x32xbf16>, vector<32x96xbf16>, vector<8x96xf32> -> vector<8x96xf32>
    %c0_5 = arith.constant 0 : index
    %c0_6 = arith.constant 0 : index
    %c0_7 = arith.constant 0 : index
    %8 = vector.load %arg5[%c0_5, %c0_6, %c0_7] : memref<1x1x96xf32, #tpu.memory_space<vmem>>, vector<1x1x96xf32>
    %9 = vector.shape_cast %8 : vector<1x1x96xf32> to vector<1x96xf32>
    %10 = vector.broadcast %9 : vector<1x96xf32> to vector<8x96xf32>
    %11 = arith.addf %7, %10 : vector<8x96xf32>
    %12 = arith.truncf %11 : vector<8x96xf32> to vector<8x96xbf16>
    %13 = vector.extract_strided_slice %12 {offsets = [0, 0], sizes = [8, 8], strides = [1, 1]} : vector<8x96xbf16> to vector<8x8xbf16>
    %14 = vector.extract_strided_slice %12 {offsets = [0, 8], sizes = [8, 8], strides = [1, 1]} : vector<8x96xbf16> to vector<8x8xbf16>
    %15 = vector.extract_strided_slice %12 {offsets = [0, 16], sizes = [8, 8], strides = [1, 1]} : vector<8x96xbf16> to vector<8x8xbf16>
    %16 = vector.extract_strided_slice %12 {offsets = [0, 24], sizes = [8, 8], strides = [1, 1]} : vector<8x96xbf16> to vector<8x8xbf16>
    %17 = vector.shape_cast %13 : vector<8x8xbf16> to vector<1x8x8xbf16>
    %18 = vector.shape_cast %14 : vector<8x8xbf16> to vector<1x8x8xbf16>
    %19 = vector.shape_cast %15 : vector<8x8xbf16> to vector<1x8x8xbf16>
    %20 = vector.shape_cast %16 : vector<8x8xbf16> to vector<1x8x8xbf16>
    %21 = tpu.concatenate %17, %18, %19, %20 in 0 : vector<1x8x8xbf16>, vector<1x8x8xbf16>, vector<1x8x8xbf16>, vector<1x8x8xbf16> -> vector<4x8x8xbf16>
    %22 = vector.extract_strided_slice %12 {offsets = [0, 32], sizes = [8, 8], strides = [1, 1]} : vector<8x96xbf16> to vector<8x8xbf16>
    %23 = vector.extract_strided_slice %12 {offsets = [0, 40], sizes = [8, 8], strides = [1, 1]} : vector<8x96xbf16> to vector<8x8xbf16>
    %24 = vector.extract_strided_slice %12 {offsets = [0, 48], sizes = [8, 8], strides = [1, 1]} : vector<8x96xbf16> to vector<8x8xbf16>
    %25 = vector.extract_strided_slice %12 {offsets = [0, 56], sizes = [8, 8], strides = [1, 1]} : vector<8x96xbf16> to vector<8x8xbf16>
    %26 = vector.shape_cast %22 : vector<8x8xbf16> to vector<1x8x8xbf16>
    %27 = vector.shape_cast %23 : vector<8x8xbf16> to vector<1x8x8xbf16>
    %28 = vector.shape_cast %24 : vector<8x8xbf16> to vector<1x8x8xbf16>
    %29 = vector.shape_cast %25 : vector<8x8xbf16> to vector<1x8x8xbf16>
    %30 = tpu.concatenate %26, %27, %28, %29 in 0 : vector<1x8x8xbf16>, vector<1x8x8xbf16>, vector<1x8x8xbf16>, vector<1x8x8xbf16> -> vector<4x8x8xbf16>
    %31 = vector.extract_strided_slice %12 {offsets = [0, 64], sizes = [8, 8], strides = [1, 1]} : vector<8x96xbf16> to vector<8x8xbf16>
    %32 = vector.extract_strided_slice %12 {offsets = [0, 72], sizes = [8, 8], strides = [1, 1]} : vector<8x96xbf16> to vector<8x8xbf16>
    %33 = vector.extract_strided_slice %12 {offsets = [0, 80], sizes = [8, 8], strides = [1, 1]} : vector<8x96xbf16> to vector<8x8xbf16>
    %34 = vector.extract_strided_slice %12 {offsets = [0, 88], sizes = [8, 8], strides = [1, 1]} : vector<8x96xbf16> to vector<8x8xbf16>
    %35 = vector.shape_cast %31 : vector<8x8xbf16> to vector<1x8x8xbf16>
    %36 = vector.shape_cast %32 : vector<8x8xbf16> to vector<1x8x8xbf16>
    %37 = vector.shape_cast %33 : vector<8x8xbf16> to vector<1x8x8xbf16>
    %38 = vector.shape_cast %34 : vector<8x8xbf16> to vector<1x8x8xbf16>
    %39 = tpu.concatenate %35, %36, %37, %38 in 0 : vector<1x8x8xbf16>, vector<1x8x8xbf16>, vector<1x8x8xbf16>, vector<1x8x8xbf16> -> vector<4x8x8xbf16>
    "tpu.trace_start"() <{level = 10 : i32, message = "nqd,nkd->nqk"}> : () -> ()
    %cst_8 = arith.constant dense<0.000000e+00> : vector<4x8x8xf32>
    %40 = tpu.matmul %21, %30, %cst_8 {dimension_numbers = #tpu.dot_dimension_numbers<[2], [2], [1], [1], [0, 0, 0, 1, 1, 1], [0], [0]>} : vector<4x8x8xbf16>, vector<4x8x8xbf16>, vector<4x8x8xf32> -> vector<4x8x8xf32>
    "tpu.trace_stop"() : () -> ()
    %41 = vector.shape_cast %40 : vector<4x8x8xf32> to vector<4x1x8x8xf32>
    %c0_9 = arith.constant 0 : index
    %c0_10 = arith.constant 0 : index
    %c0_11 = arith.constant 0 : index
    %42 = vector.load %arg3[%c0_9, %c0_10, %c0_11] : memref<1x8x8xbf16, #tpu.memory_space<vmem>>, vector<1x8x8xbf16>
    %43 = vector.shape_cast %42 : vector<1x8x8xbf16> to vector<1x1x8x8xbf16>
    %44 = arith.extf %43 : vector<1x1x8x8xbf16> to vector<1x1x8x8xf32>
    %45 = vector.broadcast %44 : vector<1x1x8x8xf32> to vector<4x1x8x8xf32>
    %46 = arith.addf %41, %45 : vector<4x1x8x8xf32>
    %cst_12 = arith.constant dense<0xFF800000> : vector<4x1x8xf32>
    %47 = vector.multi_reduction <maximumf>, %46, %cst_12 [3] : vector<4x1x8x8xf32> to vector<4x1x8xf32>
    %48 = vector.shape_cast %47 : vector<4x1x8xf32> to vector<4x1x8x1xf32>
    %49 = vector.broadcast %48 : vector<4x1x8x1xf32> to vector<4x1x8x8xf32>
    %50 = arith.subf %46, %49 : vector<4x1x8x8xf32>
    %51 = math.exp %50 : vector<4x1x8x8xf32>
    %cst_13 = arith.constant dense<0.000000e+00> : vector<4x1x8xf32>
    %52 = vector.multi_reduction <add>, %51, %cst_13 [3] : vector<4x1x8x8xf32> to vector<4x1x8xf32>
    %53 = vector.shape_cast %52 : vector<4x1x8xf32> to vector<4x1x8x1xf32>
    %54 = tpu.reciprocal %53 {approx = true} : vector<4x1x8x1xf32> -> vector<4x1x8x1xf32>
    %55 = vector.broadcast %54 : vector<4x1x8x1xf32> to vector<4x1x8x8xf32>
    %56 = arith.mulf %51, %55 : vector<4x1x8x8xf32>
    %57 = vector.shape_cast %56 : vector<4x1x8x8xf32> to vector<4x8x8xf32>
    %58 = arith.truncf %57 : vector<4x8x8xf32> to vector<4x8x8xbf16>
    "tpu.trace_start"() <{level = 10 : i32, message = "nqk,nkd->nqd"}> : () -> ()
    %cst_14 = arith.constant dense<0.000000e+00> : vector<4x8x8xf32>
    %59 = tpu.matmul %58, %39, %cst_14 {dimension_numbers = #tpu.dot_dimension_numbers<[2], [1], [1], [2], [0, 0, 0, 1, 1, 2], [0], [0]>} : vector<4x8x8xbf16>, vector<4x8x8xbf16>, vector<4x8x8xf32> -> vector<4x8x8xf32>
    "tpu.trace_stop"() : () -> ()
    %60 = vector.extract_strided_slice %59 {offsets = [0, 0, 0], sizes = [1, 8, 8], strides = [1, 1, 1]} : vector<4x8x8xf32> to vector<1x8x8xf32>
    %61 = vector.shape_cast %60 : vector<1x8x8xf32> to vector<8x8xf32>
    %62 = vector.extract_strided_slice %59 {offsets = [1, 0, 0], sizes = [1, 8, 8], strides = [1, 1, 1]} : vector<4x8x8xf32> to vector<1x8x8xf32>
    %63 = vector.shape_cast %62 : vector<1x8x8xf32> to vector<8x8xf32>
    %64 = vector.extract_strided_slice %59 {offsets = [2, 0, 0], sizes = [1, 8, 8], strides = [1, 1, 1]} : vector<4x8x8xf32> to vector<1x8x8xf32>
    %65 = vector.shape_cast %64 : vector<1x8x8xf32> to vector<8x8xf32>
    %66 = vector.extract_strided_slice %59 {offsets = [3, 0, 0], sizes = [1, 8, 8], strides = [1, 1, 1]} : vector<4x8x8xf32> to vector<1x8x8xf32>
    %67 = vector.shape_cast %66 : vector<1x8x8xf32> to vector<8x8xf32>
    %68 = tpu.concatenate %61, %63, %65, %67 in 1 : vector<8x8xf32>, vector<8x8xf32>, vector<8x8xf32>, vector<8x8xf32> -> vector<8x32xf32>
    %69 = arith.truncf %68 : vector<8x32xf32> to vector<8x32xbf16>
    %c0_15 = arith.constant 0 : index
    %c0_16 = arith.constant 0 : index
    %c0_17 = arith.constant 0 : index
    %70 = vector.load %arg6[%c0_15, %c0_16, %c0_17] : memref<1x32x32xbf16, #tpu.memory_space<vmem>>, vector<1x32x32xbf16>
    %71 = vector.shape_cast %70 : vector<1x32x32xbf16> to vector<32x32xbf16>
    %cst_18 = arith.constant dense<0.000000e+00> : vector<8x32xf32>
    %72 = tpu.matmul %69, %71, %cst_18 {dimension_numbers = #tpu.dot_dimension_numbers<[1], [0], [0], [1], [0, 0, 1, 1], [], []>} : vector<8x32xbf16>, vector<32x32xbf16>, vector<8x32xf32> -> vector<8x32xf32>
    %c0_19 = arith.constant 0 : index
    %c0_20 = arith.constant 0 : index
    %c0_21 = arith.constant 0 : index
    %73 = vector.load %arg7[%c0_19, %c0_20, %c0_21] : memref<1x1x32xf32, #tpu.memory_space<vmem>>, vector<1x1x32xf32>
    %74 = vector.shape_cast %73 : vector<1x1x32xf32> to vector<1x32xf32>
    %75 = vector.broadcast %74 : vector<1x32xf32> to vector<8x32xf32>
    %76 = arith.addf %72, %75 : vector<8x32xf32>
    %77 = arith.truncf %76 : vector<8x32xf32> to vector<8x32xbf16>
    %c0_22 = arith.constant 0 : index
    %c0_23 = arith.constant 0 : index
    %c0_24 = arith.constant 0 : index
    %78 = vector.load %arg8[%c0_22, %c0_23, %c0_24] : memref<1x32x64xbf16, #tpu.memory_space<vmem>>, vector<1x32x64xbf16>
    %79 = vector.shape_cast %78 : vector<1x32x64xbf16> to vector<32x64xbf16>
    %cst_25 = arith.constant dense<0.000000e+00> : vector<8x64xf32>
    %80 = tpu.matmul %77, %79, %cst_25 {dimension_numbers = #tpu.dot_dimension_numbers<[1], [0], [0], [1], [0, 0, 1, 1], [], []>} : vector<8x32xbf16>, vector<32x64xbf16>, vector<8x64xf32> -> vector<8x64xf32>
    %c0_26 = arith.constant 0 : index
    %c0_27 = arith.constant 0 : index
    %c0_28 = arith.constant 0 : index
    %81 = vector.load %arg9[%c0_26, %c0_27, %c0_28] : memref<1x1x64xf32, #tpu.memory_space<vmem>>, vector<1x1x64xf32>
    %82 = vector.shape_cast %81 : vector<1x1x64xf32> to vector<1x64xf32>
    %83 = vector.broadcast %82 : vector<1x64xf32> to vector<8x64xf32>
    %84 = arith.addf %80, %83 : vector<8x64xf32>
    %cst_29 = arith.constant 0.000000e+00 : f32
    %85 = vector.broadcast %cst_29 : f32 to vector<8x64xf32>
    %86 = arith.maximumf %84, %85 : vector<8x64xf32>
    %87 = arith.truncf %86 : vector<8x64xf32> to vector<8x64xbf16>
    %c0_30 = arith.constant 0 : index
    %c0_31 = arith.constant 0 : index
    %c0_32 = arith.constant 0 : index
    %88 = vector.load %arg10[%c0_30, %c0_31, %c0_32] : memref<1x64x32xbf16, #tpu.memory_space<vmem>>, vector<1x64x32xbf16>
    %89 = vector.shape_cast %88 : vector<1x64x32xbf16> to vector<64x32xbf16>
    %cst_33 = arith.constant dense<0.000000e+00> : vector<8x32xf32>
    %90 = tpu.matmul %87, %89, %cst_33 {dimension_numbers = #tpu.dot_dimension_numbers<[1], [0], [0], [1], [0, 0, 1, 1], [], []>} : vector<8x64xbf16>, vector<64x32xbf16>, vector<8x32xf32> -> vector<8x32xf32>
    %c0_34 = arith.constant 0 : index
    %c0_35 = arith.constant 0 : index
    %c0_36 = arith.constant 0 : index
    %91 = vector.load %arg11[%c0_34, %c0_35, %c0_36] : memref<1x1x32xf32, #tpu.memory_space<vmem>>, vector<1x1x32xf32>
    %92 = vector.shape_cast %91 : vector<1x1x32xf32> to vector<1x32xf32>
    %93 = vector.broadcast %92 : vector<1x32xf32> to vector<8x32xf32>
    %94 = arith.addf %90, %93 : vector<8x32xf32>
    %95 = arith.addf %94, %3 : vector<8x32xf32>
    %cst_37 = arith.constant dense<0.000000e+00> : vector<8xf32>
    %96 = vector.multi_reduction <add>, %95, %cst_37 [1] : vector<8x32xf32> to vector<8xf32>
    %97 = vector.shape_cast %96 : vector<8xf32> to vector<8x1xf32>
    %cst_38 = arith.constant 3.200000e+01 : f32
    %98 = vector.broadcast %cst_38 : f32 to vector<8x1xf32>
    %99 = arith.divf %97, %98 : vector<8x1xf32>
    %100 = vector.broadcast %99 : vector<8x1xf32> to vector<8x32xf32>
    %101 = arith.subf %95, %100 : vector<8x32xf32>
    %102 = arith.mulf %101, %101 : vector<8x32xf32>
    %cst_39 = arith.constant dense<0.000000e+00> : vector<8xf32>
    %103 = vector.multi_reduction <add>, %102, %cst_39 [1] : vector<8x32xf32> to vector<8xf32>
    %104 = vector.shape_cast %103 : vector<8xf32> to vector<8x1xf32>
    %cst_40 = arith.constant 3.200000e+01 : f32
    %105 = vector.broadcast %cst_40 : f32 to vector<8x1xf32>
    %106 = arith.divf %104, %105 : vector<8x1xf32>
    %c0_41 = arith.constant 0 : index
    %c0_42 = arith.constant 0 : index
    %c0_43 = arith.constant 0 : index
    %107 = vector.load %arg12[%c0_41, %c0_42, %c0_43] : memref<1x1x32xf32, #tpu.memory_space<vmem>>, vector<1x1x32xf32>
    %108 = vector.shape_cast %107 : vector<1x1x32xf32> to vector<1x32xf32>
    %cst_44 = arith.constant 9.99999996E-13 : f32
    %109 = vector.broadcast %cst_44 : f32 to vector<8x1xf32>
    %110 = arith.addf %106, %109 : vector<8x1xf32>
    %111 = math.rsqrt %110 : vector<8x1xf32>
    %112 = vector.broadcast %111 : vector<8x1xf32> to vector<8x32xf32>
    %113 = arith.mulf %101, %112 : vector<8x32xf32>
    %114 = vector.broadcast %108 : vector<1x32xf32> to vector<8x32xf32>
    %115 = arith.mulf %114, %113 : vector<8x32xf32>
    %c0_45 = arith.constant 0 : index
    %c0_46 = arith.constant 0 : index
    %c0_47 = arith.constant 0 : index
    %116 = vector.load %arg13[%c0_45, %c0_46, %c0_47] : memref<1x1x32xf32, #tpu.memory_space<vmem>>, vector<1x1x32xf32>
    %117 = vector.shape_cast %116 : vector<1x1x32xf32> to vector<1x32xf32>
    %118 = vector.broadcast %117 : vector<1x32xf32> to vector<8x32xf32>
    %119 = arith.addf %115, %118 : vector<8x32xf32>
    %c0_48 = arith.constant 0 : index
    %c0_49 = arith.constant 0 : index
    %120 = vector.load %arg15[%c0_48, %c0_49] : memref<8x32xf32, #tpu.memory_space<vmem>>, vector<8x32xf32>
    tpu.vector_store %arg15[%c0_48, %c0_49], %119 {strides = array<i32>} : memref<8x32xf32, #tpu.memory_space<vmem>>, vector<8x32xf32>,
    %c1_i32 = arith.constant 1 : i32
    %121 = arith.cmpi eq, %arg1, %c1_i32 : i32
    %122 = arith.extui %121 : i1 to i32
    %c0_i32_50 = arith.constant 0 : i32
    %123 = arith.cmpi ne, %122, %c0_i32_50 : i32
    scf.if %123 {
      %c0_51 = arith.constant 0 : index
      %c0_52 = arith.constant 0 : index
      %124 = vector.load %arg2[%c0_51, %c0_52] : memref<8x32xf32, #tpu.memory_space<vmem>>, vector<8x32xf32>
      %125 = arith.addf %119, %124 : vector<8x32xf32>
      %c0_53 = arith.constant 0 : index
      %c0_54 = arith.constant 0 : index
      %126 = vector.load %arg14[%c0_53, %c0_54] : memref<8x32xf32, #tpu.memory_space<vmem>>, vector<8x32xf32>
      tpu.vector_store %arg14[%c0_53, %c0_54], %125 {strides = array<i32>} : memref<8x32xf32, #tpu.memory_space<vmem>>, vector<8x32xf32>,
    } else {
    }
    return
  }
  func.func @transform_0(%arg0: i32, %arg1: i32) -> (i32, i32) {
    %c0_i32 = arith.constant 0 : i32
    %c0_i32_0 = arith.constant 0 : i32
    return %arg0, %c0_i32 : i32, i32
  }
  func.func @transform_1(%arg0: i32, %arg1: i32) -> (i32, i32, i32) {
    %c0_i32 = arith.constant 0 : i32
    %c0_i32_0 = arith.constant 0 : i32
    %c0_i32_1 = arith.constant 0 : i32
    return %arg0, %c0_i32, %c0_i32_0 : i32, i32, i32
  }
  func.func @transform_2(%arg0: i32, %arg1: i32) -> (i32, i32, i32) {
    %c0_i32 = arith.constant 0 : i32
    %c0_i32_0 = arith.constant 0 : i32
    %c0_i32_1 = arith.constant 0 : i32
    return %arg1, %c0_i32, %c0_i32_0 : i32, i32, i32
  }
  func.func @transform_3(%arg0: i32, %arg1: i32) -> (i32, i32, i32) {
    %c0_i32 = arith.constant 0 : i32
    %c0_i32_0 = arith.constant 0 : i32
    %c0_i32_1 = arith.constant 0 : i32
    return %arg1, %c0_i32, %c0_i32_0 : i32, i32, i32
  }
  func.func @transform_4(%arg0: i32, %arg1: i32) -> (i32, i32, i32) {
    %c0_i32 = arith.constant 0 : i32
    %c0_i32_0 = arith.constant 0 : i32
    %c0_i32_1 = arith.constant 0 : i32
    return %arg1, %c0_i32, %c0_i32_0 : i32, i32, i32
  }
  func.func @transform_5(%arg0: i32, %arg1: i32) -> (i32, i32, i32) {
    %c0_i32 = arith.constant 0 : i32
    %c0_i32_0 = arith.constant 0 : i32
    %c0_i32_1 = arith.constant 0 : i32
    return %arg1, %c0_i32, %c0_i32_0 : i32, i32, i32
  }
  func.func @transform_6(%arg0: i32, %arg1: i32) -> (i32, i32, i32) {
    %c0_i32 = arith.constant 0 : i32
    %c0_i32_0 = arith.constant 0 : i32
    %c0_i32_1 = arith.constant 0 : i32
    return %arg1, %c0_i32, %c0_i32_0 : i32, i32, i32
  }
  func.func @transform_7(%arg0: i32, %arg1: i32) -> (i32, i32, i32) {
    %c0_i32 = arith.constant 0 : i32
    %c0_i32_0 = arith.constant 0 : i32
    %c0_i32_1 = arith.constant 0 : i32
    return %arg1, %c0_i32, %c0_i32_0 : i32, i32, i32
  }
  func.func @transform_8(%arg0: i32, %arg1: i32) -> (i32, i32, i32) {
    %c0_i32 = arith.constant 0 : i32
    %c0_i32_0 = arith.constant 0 : i32
    %c0_i32_1 = arith.constant 0 : i32
    return %arg1, %c0_i32, %c0_i32_0 : i32, i32, i32
  }
  func.func @transform_9(%arg0: i32, %arg1: i32) -> (i32, i32, i32) {
    %c0_i32 = arith.constant 0 : i32
    %c0_i32_0 = arith.constant 0 : i32
    %c0_i32_1 = arith.constant 0 : i32
    return %arg1, %c0_i32, %c0_i32_0 : i32, i32, i32
  }
  func.func @transform_10(%arg0: i32, %arg1: i32) -> (i32, i32, i32) {
    %c0_i32 = arith.constant 0 : i32
    %c0_i32_0 = arith.constant 0 : i32
    %c0_i32_1 = arith.constant 0 : i32
    return %arg1, %c0_i32, %c0_i32_0 : i32, i32, i32
  }
  func.func @transform_11(%arg0: i32, %arg1: i32) -> (i32, i32, i32) {
    %c0_i32 = arith.constant 0 : i32
    %c0_i32_0 = arith.constant 0 : i32
    %c0_i32_1 = arith.constant 0 : i32
    return %arg1, %c0_i32, %c0_i32_0 : i32, i32, i32
  }
  func.func @transform_12(%arg0: i32, %arg1: i32) -> (i32, i32) {
    %c0_i32 = arith.constant 0 : i32
    %c0_i32_0 = arith.constant 0 : i32
    return %arg0, %c0_i32 : i32, i32
  }
}

</mosaic_0001>

<llo_original>
// kernel: tpu_custom_call.1
$region0: #{tpu_custom_call.1}
  #allocation0 [shape = 'u32[]', space=smem, size = 0x4, offset = 0x4, fixed_abs, tag = 'smem constant byte address 0x4 - core index']
  #allocation1 [shape = 'u32[144,128]{1,0:T(1,128)}', space=vmem, size = 0x12000, scoped, tag = 'internal scratch']
  #allocation2 [shape = 'f32[8,32]{1,0:T(8,128)}', space=vmem, size = 0x1000, scoped, tag = 'scratch operand']
  %s0 = inlined_call_operand.hbm [shape: f32[16,32], index: 0, kind: input, shape index: {}]
  %s1 = inlined_call_operand.hbm [shape: bf16[2,8,8], index: 1, kind: input, shape index: {}]
  %s2 = inlined_call_operand.vmem [shape: bf16[2,32,96], index: 2, kind: input, shape index: {}]
  %s3 = inlined_call_operand.vmem [shape: f32[2,1,96], index: 3, kind: input, shape index: {}]
  %s4 = inlined_call_operand.vmem [shape: bf16[2,32,32], index: 4, kind: input, shape index: {}]
  %s5 = inlined_call_operand.vmem [shape: f32[2,1,32], index: 5, kind: input, shape index: {}]
  %s6 = inlined_call_operand.vmem [shape: bf16[2,32,64], index: 6, kind: input, shape index: {}]
  %s7 = inlined_call_operand.vmem [shape: f32[2,1,64], index: 7, kind: input, shape index: {}]
  %s8 = inlined_call_operand.vmem [shape: bf16[2,64,32], index: 8, kind: input, shape index: {}]
  %s9 = inlined_call_operand.vmem [shape: f32[2,1,32], index: 9, kind: input, shape index: {}]
  %s10 = inlined_call_operand.vmem [shape: f32[2,1,32], index: 10, kind: input, shape index: {}]
  %s11 = inlined_call_operand.vmem [shape: f32[2,1,32], index: 11, kind: input, shape index: {}]
  %s12 = inlined_call_operand.hbm [shape: f32[16,32], index: 12, kind: output, shape index: {}]
  %s13 = sld [smem:[#allocation0]]
  $region97: #{tpu_custom_call.1} parent=0
    _
  %s15 = ssub.s32 1, %s13
  %s16 = scalar_select 0, %s15, %s13
  $region1: #{tpu_custom_call.1} parent=0
    #allocation3 [shape = 'u8[8192]{0}', space=vmem, size = 0x2000, scoped, tag = 'input window, operand 0']
    #allocation4 [shape = 's32[2]{0}', space=sflag, size = 0x8, scoped, tag = 'scoped memory for tpu_custom_call.1']
    #allocation5 [shape = 's32[2]{0}', space=sflag, size = 0x8, scoped, tag = 'scoped memory for tpu_custom_call.1']
    #allocation6 [shape = 'u8[4096]{0}', space=vmem, size = 0x1000, scoped, tag = 'input window, operand 1']
    #allocation7 [shape = 's32[2]{0}', space=sflag, size = 0x8, scoped, tag = 'scoped memory for tpu_custom_call.1']
    #allocation8 [shape = 'u8[8192]{0}', space=vmem, size = 0x2000, scoped, tag = 'output window, operand 0']
    %17 = vsyncpa [#allocation4], 0
    %s18 = scalar_lea.sflag [#allocation4], 1
    %19 = vsyncpa %s18, 0
    %20 = vsyncpa [#allocation7], 0
    %s21 = scalar_lea.sflag [#allocation7], 1
    %22 = vsyncpa %s21, 0
    %23 = vsyncpa [#allocation5], 0
    %s24 = scalar_lea.sflag [#allocation5], 1
    %25 = vsyncpa %s24, 0
    loop: start=0, step=1, limit=6
    $region2: #{tpu_custom_call.1} parent=1 // loop_pre_header
      _
    $region3: #{tpu_custom_call.1} parent=1 // loop_header
      %s27 = sphi 0, %s31
      %p28 = scmp.ge.s32.totalorder %s27, 6
      %s34 = sphi 0, %s46
      %s35 = sphi 0, %s42
      %s36 = sphi 0, %s34
      %s37 = sphi 0, %s35
      %s38 = sphi 0, %s36
      %s39 = sphi 0, %s37
      %s49 = sphi 0, %s51
      %s52 = sphi 0, %s49
      %s53 = sphi 0, %s52
      %s69 = sphi 0, %s53
      %s75 = sphi 0, %s77
      %s78 = sphi 0, %s75
      %s79 = sphi 0, %s78
      %s95 = sphi 0, %s79
      %s101 = sphi 0, %s103
      %s104 = sphi 0, %s101
      %s105 = sphi 0, %s104
      %s121 = sphi 0, %s105
      %s127 = sphi 0, %s129
      %s130 = sphi 0, %s127
      %s131 = sphi 0, %s130
      %s147 = sphi 0, %s131
      %s153 = sphi 0, %s155
      %s156 = sphi 0, %s153
      %s157 = sphi 0, %s156
      %s173 = sphi 0, %s157
      %s179 = sphi 0, %s181
      %s182 = sphi 0, %s179
      %s183 = sphi 0, %s182
      %s199 = sphi 0, %s183
      %s205 = sphi 0, %s207
      %s208 = sphi 0, %s205
      %s209 = sphi 0, %s208
      %s225 = sphi 0, %s209
      %s231 = sphi 0, %s233
      %s234 = sphi 0, %s231
      %s235 = sphi 0, %s234
      %s251 = sphi 0, %s235
      %s257 = sphi 0, %s259
      %s260 = sphi 0, %s257
      %s261 = sphi 0, %s260
      %s277 = sphi 0, %s261
      %s283 = sphi 0, %s285
      %s286 = sphi 0, %s283
      %s287 = sphi 0, %s286
      %s303 = sphi 0, %s287
      %s309 = sphi 0, %s311
      %s312 = sphi 0, %s309
      %s313 = sphi 0, %s312
      %s329 = sphi 0, %s313
      %s335 = sphi 0, %s337
      %s338 = sphi 0, %s335
      %s339 = sphi 0, %s338
      %s355 = sphi 0, %s339
      %s361 = sphi 0, %s363
      %s364 = sphi 0, %s361
      %s365 = sphi 0, %s364
      %s381 = sphi 0, %s365
    $region4: #{tpu_custom_call.1} parent=1 // loop_header_branch
      %30 = sbr.rel (%p28) target = $region8
    $region5: #{tpu_custom_call.1} parent=1 // loop_body
      %s32 = ssub.s32 %s27, 1
      %s33 = ssub.s32 %s27, 2
      %s40 = sadd.s32 1, %s35
      %p41 = scmp.ge.s32.totalorder %s40, 2
      %s42 = scalar_select %p41, 0, %s40
      %s43 = sadd.s32 1, %s34
      %s44 = scalar_select %p41, %s43, %s34
      %p45 = scmp.ge.s32.totalorder %s44, 2
      %s46 = scalar_select %p45, 0, %s44
      %s47 = ssub.s32 %s34, %s46
      %p48 = scmp.eq.s32.totalorder %s47, 0
      %s50 = sadd.s32 %s49, 1
      %s51 = scalar_select %p48, %s49, %s50
      %p54 = pneg %p48
      %p55 = scmp.eq.s32.totalorder %s27, 3
      %p56 = por %p54, %p55
      %p57 = scmp.ne.s32.totalorder %s49, %s52
      %p58 = scmp.eq.s32.totalorder %s27, 0
      %p59 = por %p57, %p58
      %p60 = scmp.ne.s32.totalorder %s49, %s52
      %p61 = scmp.eq.s32.totalorder %s32, 3
      %p62 = por %p60, %p61
      %p63 = scmp.ne.s32.totalorder %s52, %s53
      %p64 = scmp.eq.s32.totalorder %s32, 0
      %p65 = por %p63, %p64
      %p66 = scmp.ne.s32.totalorder %s52, %s53
      %p67 = scmp.eq.s32.totalorder %s33, 3
      %p68 = por %p66, %p67
      %p70 = scmp.ne.s32.totalorder %s53, %s69
      %p71 = scmp.eq.s32.totalorder %s33, 0
      %p72 = por %p70, %p71
      %s73 = ssub.s32 %s34, %s46
      %p74 = scmp.eq.s32.totalorder %s73, 0
      %s76 = sadd.s32 %s75, 1
      %s77 = scalar_select %p74, %s75, %s76
      %p80 = pneg %p74
      %p81 = scmp.eq.s32.totalorder %s27, 3
      %p82 = por %p80, %p81
      %p83 = scmp.ne.s32.totalorder %s75, %s78
      %p84 = scmp.eq.s32.totalorder %s27, 0
      %p85 = por %p83, %p84
      %p86 = scmp.ne.s32.totalorder %s75, %s78
      %p87 = scmp.eq.s32.totalorder %s32, 3
      %p88 = por %p86, %p87
      %p89 = scmp.ne.s32.totalorder %s78, %s79
      %p90 = scmp.eq.s32.totalorder %s32, 0
      %p91 = por %p89, %p90
      %p92 = scmp.ne.s32.totalorder %s78, %s79
      %p93 = scmp.eq.s32.totalorder %s33, 3
      %p94 = por %p92, %p93
      %p96 = scmp.ne.s32.totalorder %s79, %s95
      %p97 = scmp.eq.s32.totalorder %s33, 0
      %p98 = por %p96, %p97
      %s99 = ssub.s32 %s35, %s42
      %p100 = scmp.eq.s32.totalorder %s99, 0
      %s102 = sadd.s32 %s101, 1
      %s103 = scalar_select %p100, %s101, %s102
      %p106 = pneg %p100
      %p107 = scmp.eq.s32.totalorder %s27, 3
      %p108 = por %p106, %p107
      %p109 = scmp.ne.s32.totalorder %s101, %s104
      %p110 = scmp.eq.s32.totalorder %s27, 0
      %p111 = por %p109, %p110
      %p112 = scmp.ne.s32.totalorder %s101, %s104
      %p113 = scmp.eq.s32.totalorder %s32, 3
      %p114 = por %p112, %p113
      %p115 = scmp.ne.s32.totalorder %s104, %s105
      %p116 = scmp.eq.s32.totalorder %s32, 0
      %p117 = por %p115, %p116
      %p118 = scmp.ne.s32.totalorder %s104, %s105
      %p119 = scmp.eq.s32.totalorder %s33, 3
      %p120 = por %p118, %p119
      %p122 = scmp.ne.s32.totalorder %s105, %s121
      %p123 = scmp.eq.s32.totalorder %s33, 0
      %p124 = por %p122, %p123
      %s125 = ssub.s32 %s35, %s42
      %p126 = scmp.eq.s32.totalorder %s125, 0
      %s128 = sadd.s32 %s127, 1
      %s129 = scalar_select %p126, %s127, %s128
      %p132 = pneg %p126
      %p133 = scmp.eq.s32.totalorder %s27, 3
      %p134 = por %p132, %p133
      %p135 = scmp.ne.s32.totalorder %s127, %s130
      %p136 = scmp.eq.s32.totalorder %s27, 0
      %p137 = por %p135, %p136
      %p138 = scmp.ne.s32.totalorder %s127, %s130
      %p139 = scmp.eq.s32.totalorder %s32, 3
      %p140 = por %p138, %p139
      %p141 = scmp.ne.s32.totalorder %s130, %s131
      %p142 = scmp.eq.s32.totalorder %s32, 0
      %p143 = por %p141, %p142
      %p144 = scmp.ne.s32.totalorder %s130, %s131
      %p145 = scmp.eq.s32.totalorder %s33, 3
      %p146 = por %p144, %p145
      %p148 = scmp.ne.s32.totalorder %s131, %s147
      %p149 = scmp.eq.s32.totalorder %s33, 0
      %p150 = por %p148, %p149
      %s151 = ssub.s32 %s35, %s42
      %p152 = scmp.eq.s32.totalorder %s151, 0
      %s154 = sadd.s32 %s153, 1
      %s155 = scalar_select %p152, %s153, %s154
      %p158 = pneg %p152
      %p159 = scmp.eq.s32.totalorder %s27, 3
      %p160 = por %p158, %p159
      %p161 = scmp.ne.s32.totalorder %s153, %s156
      %p162 = scmp.eq.s32.totalorder %s27, 0
      %p163 = por %p161, %p162
      %p164 = scmp.ne.s32.totalorder %s153, %s156
      %p165 = scmp.eq.s32.totalorder %s32, 3
      %p166 = por %p164, %p165
      %p167 = scmp.ne.s32.totalorder %s156, %s157
      %p168 = scmp.eq.s32.totalorder %s32, 0
      %p169 = por %p167, %p168
      %p170 = scmp.ne.s32.totalorder %s156, %s157
      %p171 = scmp.eq.s32.totalorder %s33, 3
      %p172 = por %p170, %p171
      %p174 = scmp.ne.s32.totalorder %s157, %s173
      %p175 = scmp.eq.s32.totalorder %s33, 0
      %p176 = por %p174, %p175
      %s177 = ssub.s32 %s35, %s42
      %p178 = scmp.eq.s32.totalorder %s177, 0
      %s180 = sadd.s32 %s179, 1
      %s181 = scalar_select %p178, %s179, %s180
      %p184 = pneg %p178
      %p185 = scmp.eq.s32.totalorder %s27, 3
      %p186 = por %p184, %p185
      %p187 = scmp.ne.s32.totalorder %s179, %s182
      %p188 = scmp.eq.s32.totalorder %s27, 0
      %p189 = por %p187, %p188
      %p190 = scmp.ne.s32.totalorder %s179, %s182
      %p191 = scmp.eq.s32.totalorder %s32, 3
      %p192 = por %p190, %p191
      %p193 = scmp.ne.s32.totalorder %s182, %s183
      %p194 = scmp.eq.s32.totalorder %s32, 0
      %p195 = por %p193, %p194
      %p196 = scmp.ne.s32.totalorder %s182, %s183
      %p197 = scmp.eq.s32.totalorder %s33, 3
      %p198 = por %p196, %p197
      %p200 = scmp.ne.s32.totalorder %s183, %s199
      %p201 = scmp.eq.s32.totalorder %s33, 0
      %p202 = por %p200, %p201
      %s203 = ssub.s32 %s35, %s42
      %p204 = scmp.eq.s32.totalorder %s203, 0
      %s206 = sadd.s32 %s205, 1
      %s207 = scalar_select %p204, %s205, %s206
      %p210 = pneg %p204
      %p211 = scmp.eq.s32.totalorder %s27, 3
      %p212 = por %p210, %p211
      %p213 = scmp.ne.s32.totalorder %s205, %s208
      %p214 = scmp.eq.s32.totalorder %s27, 0
      %p215 = por %p213, %p214
      %p216 = scmp.ne.s32.totalorder %s205, %s208
      %p217 = scmp.eq.s32.totalorder %s32, 3
      %p218 = por %p216, %p217
      %p219 = scmp.ne.s32.totalorder %s208, %s209
      %p220 = scmp.eq.s32.totalorder %s32, 0
      %p221 = por %p219, %p220
      %p222 = scmp.ne.s32.totalorder %s208, %s209
      %p223 = scmp.eq.s32.totalorder %s33, 3
      %p224 = por %p222, %p223
      %p226 = scmp.ne.s32.totalorder %s209, %s225
      %p227 = scmp.eq.s32.totalorder %s33, 0
      %p228 = por %p226, %p227
      %s229 = ssub.s32 %s35, %s42
      %p230 = scmp.eq.s32.totalorder %s229, 0
      %s232 = sadd.s32 %s231, 1
      %s233 = scalar_select %p230, %s231, %s232
      %p236 = pneg %p230
      %p237 = scmp.eq.s32.totalorder %s27, 3
      %p238 = por %p236, %p237
      %p239 = scmp.ne.s32.totalorder %s231, %s234
      %p240 = scmp.eq.s32.totalorder %s27, 0
      %p241 = por %p239, %p240
      %p242 = scmp.ne.s32.totalorder %s231, %s234
      %p243 = scmp.eq.s32.totalorder %s32, 3
      %p244 = por %p242, %p243
      %p245 = scmp.ne.s32.totalorder %s234, %s235
      %p246 = scmp.eq.s32.totalorder %s32, 0
      %p247 = por %p245, %p246
      %p248 = scmp.ne.s32.totalorder %s234, %s235
      %p249 = scmp.eq.s32.totalorder %s33, 3
      %p250 = por %p248, %p249
      %p252 = scmp.ne.s32.totalorder %s235, %s251
      %p253 = scmp.eq.s32.totalorder %s33, 0
      %p254 = por %p252, %p253
      %s255 = ssub.s32 %s35, %s42
      %p256 = scmp.eq.s32.totalorder %s255, 0
      %s258 = sadd.s32 %s257, 1
      %s259 = scalar_select %p256, %s257, %s258
      %p262 = pneg %p256
      %p263 = scmp.eq.s32.totalorder %s27, 3
      %p264 = por %p262, %p263
      %p265 = scmp.ne.s32.totalorder %s257, %s260
      %p266 = scmp.eq.s32.totalorder %s27, 0
      %p267 = por %p265, %p266
      %p268 = scmp.ne.s32.totalorder %s257, %s260
      %p269 = scmp.eq.s32.totalorder %s32, 3
      %p270 = por %p268, %p269
      %p271 = scmp.ne.s32.totalorder %s260, %s261
      %p272 = scmp.eq.s32.totalorder %s32, 0
      %p273 = por %p271, %p272
      %p274 = scmp.ne.s32.totalorder %s260, %s261
      %p275 = scmp.eq.s32.totalorder %s33, 3
      %p276 = por %p274, %p275
      %p278 = scmp.ne.s32.totalorder %s261, %s277
      %p279 = scmp.eq.s32.totalorder %s33, 0
      %p280 = por %p278, %p279
      %s281 = ssub.s32 %s35, %s42
      %p282 = scmp.eq.s32.totalorder %s281, 0
      %s284 = sadd.s32 %s283, 1
      %s285 = scalar_select %p282, %s283, %s284
      %p288 = pneg %p282
      %p289 = scmp.eq.s32.totalorder %s27, 3
      %p290 = por %p288, %p289
      %p291 = scmp.ne.s32.totalorder %s283, %s286
      %p292 = scmp.eq.s32.totalorder %s27, 0
      %p293 = por %p291, %p292
      %p294 = scmp.ne.s32.totalorder %s283, %s286
      %p295 = scmp.eq.s32.totalorder %s32, 3
      %p296 = por %p294, %p295
      %p297 = scmp.ne.s32.totalorder %s286, %s287
      %p298 = scmp.eq.s32.totalorder %s32, 0
      %p299 = por %p297, %p298
      %p300 = scmp.ne.s32.totalorder %s286, %s287
      %p301 = scmp.eq.s32.totalorder %s33, 3
      %p302 = por %p300, %p301
      %p304 = scmp.ne.s32.totalorder %s287, %s303
      %p305 = scmp.eq.s32.totalorder %s33, 0
      %p306 = por %p304, %p305
      %s307 = ssub.s32 %s35, %s42
      %p308 = scmp.eq.s32.totalorder %s307, 0
      %s310 = sadd.s32 %s309, 1
      %s311 = scalar_select %p308, %s309, %s310
      %p314 = pneg %p308
      %p315 = scmp.eq.s32.totalorder %s27, 3
      %p316 = por %p314, %p315
      %p317 = scmp.ne.s32.totalorder %s309, %s312
      %p318 = scmp.eq.s32.totalorder %s27, 0
      %p319 = por %p317, %p318
      %p320 = scmp.ne.s32.totalorder %s309, %s312
      %p321 = scmp.eq.s32.totalorder %s32, 3
      %p322 = por %p320, %p321
      %p323 = scmp.ne.s32.totalorder %s312, %s313
      %p324 = scmp.eq.s32.totalorder %s32, 0
      %p325 = por %p323, %p324
      %p326 = scmp.ne.s32.totalorder %s312, %s313
      %p327 = scmp.eq.s32.totalorder %s33, 3
      %p328 = por %p326, %p327
      %p330 = scmp.ne.s32.totalorder %s313, %s329
      %p331 = scmp.eq.s32.totalorder %s33, 0
      %p332 = por %p330, %p331
      %s333 = ssub.s32 %s35, %s42
      %p334 = scmp.eq.s32.totalorder %s333, 0
      %s336 = sadd.s32 %s335, 1
      %s337 = scalar_select %p334, %s335, %s336
      %p340 = pneg %p334
      %p341 = scmp.eq.s32.totalorder %s27, 3
      %p342 = por %p340, %p341
      %p343 = scmp.ne.s32.totalorder %s335, %s338
      %p344 = scmp.eq.s32.totalorder %s27, 0
      %p345 = por %p343, %p344
      %p346 = scmp.ne.s32.totalorder %s335, %s338
      %p347 = scmp.eq.s32.totalorder %s32, 3
      %p348 = por %p346, %p347
      %p349 = scmp.ne.s32.totalorder %s338, %s339
      %p350 = scmp.eq.s32.totalorder %s32, 0
      %p351 = por %p349, %p350
      %p352 = scmp.ne.s32.totalorder %s338, %s339
      %p353 = scmp.eq.s32.totalorder %s33, 3
      %p354 = por %p352, %p353
      %p356 = scmp.ne.s32.totalorder %s339, %s355
      %p357 = scmp.eq.s32.totalorder %s33, 0
      %p358 = por %p356, %p357
      %s359 = ssub.s32 %s34, %s46
      %p360 = scmp.eq.s32.totalorder %s359, 0
      %s362 = sadd.s32 %s361, 1
      %s363 = scalar_select %p360, %s361, %s362
      %p366 = pneg %p360
      %p367 = scmp.eq.s32.totalorder %s27, 3
      %p368 = por %p366, %p367
      %p369 = scmp.ne.s32.totalorder %s361, %s364
      %p370 = scmp.eq.s32.totalorder %s27, 0
      %p371 = por %p369, %p370
      %p372 = scmp.ne.s32.totalorder %s361, %s364
      %p373 = scmp.eq.s32.totalorder %s32, 3
      %p374 = por %p372, %p373
      %p375 = scmp.ne.s32.totalorder %s364, %s365
      %p376 = scmp.eq.s32.totalorder %s32, 0
      %p377 = por %p375, %p376
      %p378 = scmp.ne.s32.totalorder %s364, %s365
      %p379 = scmp.eq.s32.totalorder %s33, 3
      %p380 = por %p378, %p379
      %p382 = scmp.ne.s32.totalorder %s365, %s381
      %p383 = scmp.eq.s32.totalorder %s33, 0
      %p384 = por %p382, %p383
      %p385 = scmp.le.s32.totalorder 1, %s27
      %p386 = scmp.lt.s32.totalorder %s27, 5
      %p387 = pnand %p385, %p386
      %p388 = pneg %p387
      // Predicated region
      $region9: #{tpu_custom_call.1} parent=5 // pred_check
        _
      $region10: #{tpu_custom_call.1} parent=5 // pred_check_branch
        %390 = sbr.rel (%p387) target = $region12
      $region11: #{tpu_custom_call.1} parent=5 // pred_region
        %s391 = ssub.s32 %s27, 1
      $region12: #{tpu_custom_call.1} parent=5 // pred_fallthru
        _
      %p392 = scmp.lt.s32.totalorder %s27, 4
      // Predicated region
      $region13: #{tpu_custom_call.1} parent=5 // pred_check
        %p393 = pneg %p392
      $region14: #{tpu_custom_call.1} parent=5 // pred_check_branch
        %395 = sbr.rel (%p393) target = $region16
      $region15: #{tpu_custom_call.1} parent=5 // pred_region
        // Predicated region
        $region17: #{tpu_custom_call.1} parent=15 // pred_check
          %p396 = pneg %p59
        $region18: #{tpu_custom_call.1} parent=15 // pred_check_branch
          %398 = sbr.rel (%p396) target = $region20
        $region19: #{tpu_custom_call.1} parent=15 // pred_region
          %s399 = sand.u32 %s49, 1
          %s400 = scalar_lea.sflag [#allocation4], %s399
          %s401 = sand.u32 %s49, 1
          %s402 = smul.addr %s401, 8
          %s403 = scalar_lea.vmem [#allocation3], %s402
          %s405 = ssub.s32 128, 128
          %406 = vsyncadd %s400, %s405
          %s407 = smul.addr %s34, 128
          %s408 = scalar_lea.hbm %s0, %s407
          %s410 = sshll.u32 %s403, 4
          %s411 = int_to_ptr.vmem [resolvable:$true] %s410
          %413 = dma.hbm_to_vmem [thread:$0]  %s408, 128, %s411, %s400
        $region20: #{tpu_custom_call.1} parent=15 // pred_fallthru
          _
        // Predicated region
        $region21: #{tpu_custom_call.1} parent=15 // pred_check
          %p414 = pneg %p85
        $region22: #{tpu_custom_call.1} parent=15 // pred_check_branch
          %416 = sbr.rel (%p414) target = $region24
        $region23: #{tpu_custom_call.1} parent=15 // pred_region
          %s417 = sand.u32 %s75, 1
          %s418 = scalar_lea.sflag [#allocation7], %s417
          %s419 = sand.u32 %s75, 1
          %s420 = smul.addr %s419, 4
          %s421 = scalar_lea.vmem [#allocation6], %s420
          %s423 = ssub.s32 64, 64
          %424 = vsyncadd %s418, %s423
          %s425 = smul.addr %s34, 64
          %s426 = scalar_lea.hbm %s1, %s425
          %s428 = sshll.u32 %s421, 4
          %s429 = int_to_ptr.vmem [resolvable:$true] %s428
          %431 = dma.hbm_to_vmem [thread:$0]  %s426, 64, %s429, %s418
        $region24: #{tpu_custom_call.1} parent=15 // pred_fallthru
          _
        // Predicated region
        $region25: #{tpu_custom_call.1} parent=15 // pred_check
          %p432 = pneg %p111
        $region26: #{tpu_custom_call.1} parent=15 // pred_check_branch
          %434 = sbr.rel (%p432) target = $region28
        $region27: #{tpu_custom_call.1} parent=15 // pred_region
          %p435 = scmp.lt.s32.totalorder %s35, 1
          %s436 = scalar_select %p435, %s35, 1
          %s437 = smul.addr %s436, 4
          %s438 = smul.addr %s437, 4
          %s439 = scalar_lea.vmem %s2, %s438
        $region28: #{tpu_custom_call.1} parent=15 // pred_fallthru
          _
        // Predicated region
        $region29: #{tpu_custom_call.1} parent=15 // pred_check
          %p440 = pneg %p137
        $region30: #{tpu_custom_call.1} parent=15 // pred_check_branch
          %442 = sbr.rel (%p440) target = $region32
        $region31: #{tpu_custom_call.1} parent=15 // pred_region
          %p443 = scmp.lt.s32.totalorder %s35, 1
          %s444 = scalar_select %p443, %s35, 1
          %s445 = scalar_lea.vmem %s3, %s444
        $region32: #{tpu_custom_call.1} parent=15 // pred_fallthru
          _
        // Predicated region
        $region33: #{tpu_custom_call.1} parent=15 // pred_check
          %p446 = pneg %p163
        $region34: #{tpu_custom_call.1} parent=15 // pred_check_branch
          %448 = sbr.rel (%p446) target = $region36
        $region35: #{tpu_custom_call.1} parent=15 // pred_region
          %p449 = scmp.lt.s32.totalorder %s35, 1
          %s450 = scalar_select %p449, %s35, 1
          %s451 = smul.addr %s450, 4
          %s452 = smul.addr %s451, 4
          %s453 = scalar_lea.vmem %s4, %s452
        $region36: #{tpu_custom_call.1} parent=15 // pred_fallthru
          _
        // Predicated region
        $region37: #{tpu_custom_call.1} parent=15 // pred_check
          %p454 = pneg %p189
        $region38: #{tpu_custom_call.1} parent=15 // pred_check_branch
          %456 = sbr.rel (%p454) target = $region40
        $region39: #{tpu_custom_call.1} parent=15 // pred_region
          %p457 = scmp.lt.s32.totalorder %s35, 1
          %s458 = scalar_select %p457, %s35, 1
          %s459 = scalar_lea.vmem %s5, %s458
        $region40: #{tpu_custom_call.1} parent=15 // pred_fallthru
          _
        // Predicated region
        $region41: #{tpu_custom_call.1} parent=15 // pred_check
          %p460 = pneg %p215
        $region42: #{tpu_custom_call.1} parent=15 // pred_check_branch
          %462 = sbr.rel (%p460) target = $region44
        $region43: #{tpu_custom_call.1} parent=15 // pred_region
          %p463 = scmp.lt.s32.totalorder %s35, 1
          %s464 = scalar_select %p463, %s35, 1
          %s465 = smul.addr %s464, 4
          %s466 = smul.addr %s465, 4
          %s467 = scalar_lea.vmem %s6, %s466
        $region44: #{tpu_custom_call.1} parent=15 // pred_fallthru
          _
        // Predicated region
        $region45: #{tpu_custom_call.1} parent=15 // pred_check
          %p468 = pneg %p241
        $region46: #{tpu_custom_call.1} parent=15 // pred_check_branch
          %470 = sbr.rel (%p468) target = $region48
        $region47: #{tpu_custom_call.1} parent=15 // pred_region
          %p471 = scmp.lt.s32.totalorder %s35, 1
          %s472 = scalar_select %p471, %s35, 1
          %s473 = scalar_lea.vmem %s7, %s472
        $region48: #{tpu_custom_call.1} parent=15 // pred_fallthru
          _
        // Predicated region
        $region49: #{tpu_custom_call.1} parent=15 // pred_check
          %p474 = pneg %p267
        $region50: #{tpu_custom_call.1} parent=15 // pred_check_branch
          %476 = sbr.rel (%p474) target = $region52
        $region51: #{tpu_custom_call.1} parent=15 // pred_region
          %p477 = scmp.lt.s32.totalorder %s35, 1
          %s478 = scalar_select %p477, %s35, 1
          %s479 = smul.addr %s478, 8
          %s480 = smul.addr %s479, 4
          %s481 = scalar_lea.vmem %s8, %s480
        $region52: #{tpu_custom_call.1} parent=15 // pred_fallthru
          _
        // Predicated region
        $region53: #{tpu_custom_call.1} parent=15 // pred_check
          %p482 = pneg %p293
        $region54: #{tpu_custom_call.1} parent=15 // pred_check_branch
          %484 = sbr.rel (%p482) target = $region56
        $region55: #{tpu_custom_call.1} parent=15 // pred_region
          %p485 = scmp.lt.s32.totalorder %s35, 1
          %s486 = scalar_select %p485, %s35, 1
          %s487 = scalar_lea.vmem %s9, %s486
        $region56: #{tpu_custom_call.1} parent=15 // pred_fallthru
          _
        // Predicated region
        $region57: #{tpu_custom_call.1} parent=15 // pred_check
          %p488 = pneg %p319
        $region58: #{tpu_custom_call.1} parent=15 // pred_check_branch
          %490 = sbr.rel (%p488) target = $region60
        $region59: #{tpu_custom_call.1} parent=15 // pred_region
          %p491 = scmp.lt.s32.totalorder %s35, 1
          %s492 = scalar_select %p491, %s35, 1
          %s493 = scalar_lea.vmem %s10, %s492
        $region60: #{tpu_custom_call.1} parent=15 // pred_fallthru
          _
        // Predicated region
        $region61: #{tpu_custom_call.1} parent=15 // pred_check
          %p494 = pneg %p345
        $region62: #{tpu_custom_call.1} parent=15 // pred_check_branch
          %496 = sbr.rel (%p494) target = $region64
        $region63: #{tpu_custom_call.1} parent=15 // pred_region
          %p497 = scmp.lt.s32.totalorder %s35, 1
          %s498 = scalar_select %p497, %s35, 1
          %s499 = scalar_lea.vmem %s11, %s498
        $region64: #{tpu_custom_call.1} parent=15 // pred_fallthru
          _
      $region16: #{tpu_custom_call.1} parent=5 // pred_fallthru
        _
      %p500 = scmp.le.s32.totalorder 1, %s27
      %p501 = scmp.lt.s32.totalorder %s27, 5
      %p502 = pnand %p500, %p501
      %p503 = pneg %p502
      // Predicated region
      $region65: #{tpu_custom_call.1} parent=5 // pred_check
        _
      $region66: #{tpu_custom_call.1} parent=5 // pred_check_branch
        %505 = sbr.rel (%p502) target = $region68
      $region67: #{tpu_custom_call.1} parent=5 // pred_region
        %s506 = ssub.s32 %s27, 1
        %s507 = sand.u32 %s52, 1
        %s508 = scalar_lea.sflag [#allocation4], %s507
        %s509 = sand.u32 %s52, 1
        %s510 = smul.addr %s509, 8
        %s511 = scalar_lea.vmem [#allocation3], %s510
        // Predicated region
        $region69: #{tpu_custom_call.1} parent=67 // pred_check
          %p512 = pneg %p65
        $region70: #{tpu_custom_call.1} parent=67 // pred_check_branch
          %514 = sbr.rel (%p512) target = $region72
        $region71: #{tpu_custom_call.1} parent=67 // pred_region
          %515 = dma.done %s508, 128
        $region72: #{tpu_custom_call.1} parent=67 // pred_fallthru
          _
        %s516 = sand.u32 %s78, 1
        %s517 = scalar_lea.sflag [#allocation7], %s516
        %s518 = sand.u32 %s78, 1
        %s519 = smul.addr %s518, 4
        %s520 = scalar_lea.vmem [#allocation6], %s519
        // Predicated region
        $region73: #{tpu_custom_call.1} parent=67 // pred_check
          %p521 = pneg %p91
        $region74: #{tpu_custom_call.1} parent=67 // pred_check_branch
          %523 = sbr.rel (%p521) target = $region76
        $region75: #{tpu_custom_call.1} parent=67 // pred_region
          %524 = dma.done %s517, 64
        $region76: #{tpu_custom_call.1} parent=67 // pred_fallthru
          _
        %s525 = sand.u32 %s52, 1
        %s526 = scalar_lea.sflag [#allocation4], %s525
        %s527 = sand.u32 %s52, 1
        %s528 = smul.addr %s527, 8
        %s529 = scalar_lea.vmem [#allocation3], %s528
        %p530 = pneg %p65
        %p531 = pneg %p62
        %s532 = sand.u32 %s78, 1
        %s533 = scalar_lea.sflag [#allocation7], %s532
        %s534 = sand.u32 %s78, 1
        %s535 = smul.addr %s534, 4
        %s536 = scalar_lea.vmem [#allocation6], %s535
        %p537 = pneg %p91
        %p538 = pneg %p88
        %p539 = scmp.lt.s32.totalorder %s37, 1
        %s540 = scalar_select %p539, %s37, 1
        %s541 = smul.addr %s540, 4
        %s542 = smul.addr %s541, 4
        %s543 = scalar_lea.vmem %s2, %s542
        %p544 = pneg %p117
        %p545 = pneg %p114
        %p546 = scmp.lt.s32.totalorder %s37, 1
        %s547 = scalar_select %p546, %s37, 1
        %s548 = scalar_lea.vmem %s3, %s547
        %p549 = pneg %p143
        %p550 = pneg %p140
        %p551 = scmp.lt.s32.totalorder %s37, 1
        %s552 = scalar_select %p551, %s37, 1
        %s553 = smul.addr %s552, 4
        %s554 = smul.addr %s553, 4
        %s555 = scalar_lea.vmem %s4, %s554
        %p556 = pneg %p169
        %p557 = pneg %p166
        %p558 = scmp.lt.s32.totalorder %s37, 1
        %s559 = scalar_select %p558, %s37, 1
        %s560 = scalar_lea.vmem %s5, %s559
        %p561 = pneg %p195
        %p562 = pneg %p192
        %p563 = scmp.lt.s32.totalorder %s37, 1
        %s564 = scalar_select %p563, %s37, 1
        %s565 = smul.addr %s564, 4
        %s566 = smul.addr %s565, 4
        %s567 = scalar_lea.vmem %s6, %s566
        %p568 = pneg %p221
        %p569 = pneg %p218
        %p570 = scmp.lt.s32.totalorder %s37, 1
        %s571 = scalar_select %p570, %s37, 1
        %s572 = scalar_lea.vmem %s7, %s571
        %p573 = pneg %p247
        %p574 = pneg %p244
        %p575 = scmp.lt.s32.totalorder %s37, 1
        %s576 = scalar_select %p575, %s37, 1
        %s577 = smul.addr %s576, 8
        %s578 = smul.addr %s577, 4
        %s579 = scalar_lea.vmem %s8, %s578
        %p580 = pneg %p273
        %p581 = pneg %p270
        %p582 = scmp.lt.s32.totalorder %s37, 1
        %s583 = scalar_select %p582, %s37, 1
        %s584 = scalar_lea.vmem %s9, %s583
        %p585 = pneg %p299
        %p586 = pneg %p296
        %p587 = scmp.lt.s32.totalorder %s37, 1
        %s588 = scalar_select %p587, %s37, 1
        %s589 = scalar_lea.vmem %s10, %s588
        %p590 = pneg %p325
        %p591 = pneg %p322
        %p592 = scmp.lt.s32.totalorder %s37, 1
        %s593 = scalar_select %p592, %s37, 1
        %s594 = scalar_lea.vmem %s11, %s593
        %p595 = pneg %p351
        %p596 = pneg %p348
        %p597 = pneg %p377
        %p598 = pneg %p374
        %s599 = sand.u32 %s364, 1
        %s600 = scalar_lea.sflag [#allocation5], %s599
        %s601 = sand.u32 %s364, 1
        %s602 = smul.addr %s601, 8
        %s603 = scalar_lea.vmem [#allocation8], %s602
        %p604 = scmp.lt.s32.totalorder %s37, 1
        %s605 = scalar_select %p604, %s37, 1
        %s606 = smul.addr %s605, 4
        %s607 = smul.addr %s606, 4
        %s608 = scalar_lea.vmem %s2, %s607
        %p609 = scmp.lt.s32.totalorder %s37, 1
        %s610 = scalar_select %p609, %s37, 1
        %s611 = scalar_lea.vmem %s3, %s610
        %p612 = scmp.lt.s32.totalorder %s37, 1
        %s613 = scalar_select %p612, %s37, 1
        %s614 = smul.addr %s613, 4
        %s615 = smul.addr %s614, 4
        %s616 = scalar_lea.vmem %s4, %s615
        %p617 = scmp.lt.s32.totalorder %s37, 1
        %s618 = scalar_select %p617, %s37, 1
        %s619 = scalar_lea.vmem %s5, %s618
        %p620 = scmp.lt.s32.totalorder %s37, 1
        %s621 = scalar_select %p620, %s37, 1
        %s622 = smul.addr %s621, 4
        %s623 = smul.addr %s622, 4
        %s624 = scalar_lea.vmem %s6, %s623
        %p625 = scmp.lt.s32.totalorder %s37, 1
        %s626 = scalar_select %p625, %s37, 1
        %s627 = scalar_lea.vmem %s7, %s626
        %p628 = scmp.lt.s32.totalorder %s37, 1
        %s629 = scalar_select %p628, %s37, 1
        %s630 = smul.addr %s629, 8
        %s631 = smul.addr %s630, 4
        %s632 = scalar_lea.vmem %s8, %s631
        %p633 = scmp.lt.s32.totalorder %s37, 1
        %s634 = scalar_select %p633, %s37, 1
        %s635 = scalar_lea.vmem %s9, %s634
        %p636 = scmp.lt.s32.totalorder %s37, 1
        %s637 = scalar_select %p636, %s37, 1
        %s638 = scalar_lea.vmem %s10, %s637
        %p639 = scmp.lt.s32.totalorder %s37, 1
        %s640 = scalar_select %p639, %s37, 1
        %s641 = scalar_lea.vmem %s11, %s640
        %p643 = scmp.eq.s32.totalorder %s37, 0
        // Predicated region
        $region77: #{tpu_custom_call.1} parent=67 // pred_check
          %p644 = pneg %p643
        $region78: #{tpu_custom_call.1} parent=67 // pred_check_branch
          %646 = sbr.rel (%p644) target = $region80
        $region79: #{tpu_custom_call.1} parent=67 // pred_region
          %v647 = vld [vmem:[%s511] sm:$0xff]
          %vm648 = vcmask 261120
          %649 = vst.msk [vmem:[#allocation2] sm:$0xff] %vm648, %v647
        $region80: #{tpu_custom_call.1} parent=67 // pred_fallthru
          _
        %v650 = vld [vmem:[#allocation2] sm:$0xff]
        %v651 = vpack.c.bf16 %v650, %v650
        %v652 = vld [vmem:[%s608] sm:$0xf]
        %v653 = vld [vmem:[%s608 + $0x4] sm:$0xf]
        %v654 = vld [vmem:[%s608 + $0x8] sm:$0xf]
        %v655 = vld [vmem:[%s608 + $0xc] sm:$0xf]
        %v656 = vld [vmem:[%s611] sm:$0x1]
        %v658 = vlaneseq
        %v659 = vshrl.u32 %v658, 7
        %v660 = vsub.s32 0, %v659
        %v661 = vrot.slane %v656, %v660
        %v667 = vunpack.c.l.b16 %v652
        %v668 = vunpack.c.l.b16 %v653
        %v669 = vunpack.c.l.b16 %v654
        %v670 = vunpack.c.l.b16 %v655
        %v671 = vpack.c.b16 %v668, %v667
        %v672 = vpack.c.b16 %v670, %v669
        %vm675 = vcmask 261120
        %v677 = vsel %vm675, %v651, 0
        %679 = vmatprep.subr.bf16.mxu0 0
        %680 = vmatpush1.bf16.msra.mxu0 0
        %681 = vmatprep.subr.bf16.mxu0 0
        %682 = vmatpush1.bf16.msra.mxu0 0
        %683 = vmatprep.subr.bf16.mxu0 0
        %684 = vmatpush1.bf16.msra.mxu0 0
        %685 = vmatprep.subr.bf16.mxu0 0
        %686 = vmatpush1.bf16.msra.mxu0 0
        %687 = vmatprep.subr.bf16.mxu0 0
        %688 = vmatpush1.bf16.msra.mxu0 0
        %689 = vmatprep.subr.bf16.mxu0 0
        %690 = vmatpush1.bf16.msra.mxu0 0
        %691 = vmatprep.subr.bf16.mxu0 0
        %692 = vmatpush1.bf16.msra.mxu0 %v672
        %693 = vmatprep.subr.bf16.mxu0 0
        %694 = vmatpush1.bf16.msra.mxu0 %v671
        %695 = vmatprep.subr.bf16.mxu0 0
        %696 = vmatpush2.bf16.msra.mxu0 0
        %697 = vmatprep.subr.bf16.mxu0 0
        %698 = vmatpush2.bf16.msra.mxu0 0
        %699 = vmatprep.subr.bf16.mxu0 0
        %700 = vmatpush2.bf16.msra.mxu0 0
        %701 = vmatprep.subr.bf16.mxu0 0
        %702 = vmatpush2.bf16.msra.mxu0 0
        %703 = vmatprep.subr.bf16.mxu0 0
        %704 = vmatpush2.bf16.msra.mxu0 0
        %705 = vmatprep.subr.bf16.mxu0 0
        %706 = vmatpush2.bf16.msra.mxu0 0
        %707 = vmatprep.subr.bf16.mxu0 0
        %708 = vmatpush2.bf16.msra.mxu0 0
        %709 = vmatprep.subr.bf16.mxu0 0
        %710 = vmatpush2.bf16.msra.mxu0 0
        %711 = vmatprep.mubr.bf16.mxu0 0
        %712 = vmatmul.mubr.bf16.gmra.mxu0 %v677
        %v713 = vpop.f32.mrf.mxu0
        %v714 = vadd.f32 %v661, %v713
        %v715 = vpop.f32.mrf.mxu0
        %v716 = vpop.f32.mrf.mxu0
        %v717 = vpop.f32.mrf.mxu0
        %718 = vdwg.mxu0
        %v719 = vpack.c.bf16 %v714, %v714
        %721 = vrot.lane.b32.xlu0 %v719, 120
        %v722 = vpop.permute.xlu0 %721
        %723 = vrot.lane.b32.xlu0 %v719, 112
        %v724 = vpop.permute.xlu0 %723
        %725 = vrot.lane.b32.xlu0 %v719, 104
        %v726 = vpop.permute.xlu0 %725
        %727 = vrot.lane.b32.xlu0 %v719, 96
        %v728 = vpop.permute.xlu0 %727
        %vm729 = vcmask 64512
        %v731 = vsel %vm729, %v719, 0
        %v734 = vsel %vm729, %v728, 0
        %736 = vmatprep.subr.bf16.mxu0 0
        %737 = vmatpush1.bf16.xpose.msra.mxu0 0
        %738 = vmatprep.subr.bf16.mxu0 0
        %739 = vmatpush1.bf16.xpose.msra.mxu0 0
        %740 = vmatprep.subr.bf16.mxu0 0
        %741 = vmatpush1.bf16.xpose.msra.mxu0 0
        %742 = vmatprep.subr.bf16.mxu0 0
        %743 = vmatpush1.bf16.xpose.msra.mxu0 0
        %744 = vmatprep.subr.bf16.mxu0 0
        %745 = vmatpush1.bf16.xpose.msra.mxu0 0
        %746 = vmatprep.subr.bf16.mxu0 0
        %747 = vmatpush1.bf16.xpose.msra.mxu0 0
        %748 = vmatprep.subr.bf16.mxu0 0
        %749 = vmatpush1.bf16.xpose.msra.mxu0 0
        %750 = vmatprep.subr.bf16.mxu0 0
        %751 = vmatpush1.bf16.xpose.msra.mxu0 %v734
        %752 = vmatprep.subr.bf16.mxu0 0
        %753 = vmatpush2.bf16.xpose.msra.mxu0 0
        %754 = vmatprep.subr.bf16.mxu0 0
        %755 = vmatpush2.bf16.xpose.msra.mxu0 0
        %756 = vmatprep.subr.bf16.mxu0 0
        %757 = vmatpush2.bf16.xpose.msra.mxu0 0
        %758 = vmatprep.subr.bf16.mxu0 0
        %759 = vmatpush2.bf16.xpose.msra.mxu0 0
        %760 = vmatprep.subr.bf16.mxu0 0
        %761 = vmatpush2.bf16.xpose.msra.mxu0 0
        %762 = vmatprep.subr.bf16.mxu0 0
        %763 = vmatpush2.bf16.xpose.msra.mxu0 0
        %764 = vmatprep.subr.bf16.mxu0 0
        %765 = vmatpush2.bf16.xpose.msra.mxu0 0
        %766 = vmatprep.subr.bf16.mxu0 0
        %767 = vmatpush2.bf16.xpose.msra.mxu0 0
        %768 = vmatprep.mubr.bf16.mxu0 0
        %769 = vmatmul.mubr.bf16.gmra.mxu0 %v731
        %v770 = vpop.f32.mrf.mxu0
        %v771 = vadd.f32 0.0, %v770
        %v772 = vpop.f32.mrf.mxu0
        %v773 = vpop.f32.mrf.mxu0
        %v774 = vpop.f32.mrf.mxu0
        %775 = vdwg.mxu0
        %776 = vrot.lane.b32.xlu0 %v722, 96
        %v777 = vpop.permute.xlu0 %776
        %v779 = vsel %vm729, %v722, 0
        %v782 = vsel %vm729, %v777, 0
        %784 = vmatprep.subr.bf16.mxu0 0
        %785 = vmatpush1.bf16.xpose.msra.mxu0 0
        %786 = vmatprep.subr.bf16.mxu0 0
        %787 = vmatpush1.bf16.xpose.msra.mxu0 0
        %788 = vmatprep.subr.bf16.mxu0 0
        %789 = vmatpush1.bf16.xpose.msra.mxu0 0
        %790 = vmatprep.subr.bf16.mxu0 0
        %791 = vmatpush1.bf16.xpose.msra.mxu0 0
        %792 = vmatprep.subr.bf16.mxu0 0
        %793 = vmatpush1.bf16.xpose.msra.mxu0 0
        %794 = vmatprep.subr.bf16.mxu0 0
        %795 = vmatpush1.bf16.xpose.msra.mxu0 0
        %796 = vmatprep.subr.bf16.mxu0 0
        %797 = vmatpush1.bf16.xpose.msra.mxu0 0
        %798 = vmatprep.subr.bf16.mxu0 0
        %799 = vmatpush1.bf16.xpose.msra.mxu0 %v782
        %800 = vmatprep.subr.bf16.mxu0 0
        %801 = vmatpush2.bf16.xpose.msra.mxu0 0
        %802 = vmatprep.subr.bf16.mxu0 0
        %803 = vmatpush2.bf16.xpose.msra.mxu0 0
        %804 = vmatprep.subr.bf16.mxu0 0
        %805 = vmatpush2.bf16.xpose.msra.mxu0 0
        %806 = vmatprep.subr.bf16.mxu0 0
        %807 = vmatpush2.bf16.xpose.msra.mxu0 0
        %808 = vmatprep.subr.bf16.mxu0 0
        %809 = vmatpush2.bf16.xpose.msra.mxu0 0
        %810 = vmatprep.subr.bf16.mxu0 0
        %811 = vmatpush2.bf16.xpose.msra.mxu0 0
        %812 = vmatprep.subr.bf16.mxu0 0
        %813 = vmatpush2.bf16.xpose.msra.mxu0 0
        %814 = vmatprep.subr.bf16.mxu0 0
        %815 = vmatpush2.bf16.xpose.msra.mxu0 0
        %816 = vmatprep.mubr.bf16.mxu0 0
        %817 = vmatmul.mubr.bf16.gmra.mxu0 %v779
        %v818 = vpop.f32.mrf.mxu0
        %v819 = vadd.f32 0.0, %v818
        %v820 = vpop.f32.mrf.mxu0
        %v821 = vpop.f32.mrf.mxu0
        %v822 = vpop.f32.mrf.mxu0
        %823 = vdwg.mxu0
        %824 = vrot.lane.b32.xlu0 %v724, 96
        %v825 = vpop.permute.xlu0 %824
        %v827 = vsel %vm729, %v724, 0
        %v830 = vsel %vm729, %v825, 0
        %832 = vmatprep.subr.bf16.mxu0 0
        %833 = vmatpush1.bf16.xpose.msra.mxu0 0
        %834 = vmatprep.subr.bf16.mxu0 0
        %835 = vmatpush1.bf16.xpose.msra.mxu0 0
        %836 = vmatprep.subr.bf16.mxu0 0
        %837 = vmatpush1.bf16.xpose.msra.mxu0 0
        %838 = vmatprep.subr.bf16.mxu0 0
        %839 = vmatpush1.bf16.xpose.msra.mxu0 0
        %840 = vmatprep.subr.bf16.mxu0 0
        %841 = vmatpush1.bf16.xpose.msra.mxu0 0
        %842 = vmatprep.subr.bf16.mxu0 0
        %843 = vmatpush1.bf16.xpose.msra.mxu0 0
        %844 = vmatprep.subr.bf16.mxu0 0
        %845 = vmatpush1.bf16.xpose.msra.mxu0 0
        %846 = vmatprep.subr.bf16.mxu0 0
        %847 = vmatpush1.bf16.xpose.msra.mxu0 %v830
        %848 = vmatprep.subr.bf16.mxu0 0
        %849 = vmatpush2.bf16.xpose.msra.mxu0 0
        %850 = vmatprep.subr.bf16.mxu0 0
        %851 = vmatpush2.bf16.xpose.msra.mxu0 0
        %852 = vmatprep.subr.bf16.mxu0 0
        %853 = vmatpush2.bf16.xpose.msra.mxu0 0
        %854 = vmatprep.subr.bf16.mxu0 0
        %855 = vmatpush2.bf16.xpose.msra.mxu0 0
        %856 = vmatprep.subr.bf16.mxu0 0
        %857 = vmatpush2.bf16.xpose.msra.mxu0 0
        %858 = vmatprep.subr.bf16.mxu0 0
        %859 = vmatpush2.bf16.xpose.msra.mxu0 0
        %860 = vmatprep.subr.bf16.mxu0 0
        %861 = vmatpush2.bf16.xpose.msra.mxu0 0
        %862 = vmatprep.subr.bf16.mxu0 0
        %863 = vmatpush2.bf16.xpose.msra.mxu0 0
        %864 = vmatprep.mubr.bf16.mxu0 0
        %865 = vmatmul.mubr.bf16.gmra.mxu0 %v827
        %v866 = vpop.f32.mrf.mxu0
        %v867 = vadd.f32 0.0, %v866
        %v868 = vpop.f32.mrf.mxu0
        %v869 = vpop.f32.mrf.mxu0
        %v870 = vpop.f32.mrf.mxu0
        %871 = vdwg.mxu0
        %872 = vrot.lane.b32.xlu0 %v726, 96
        %v873 = vpop.permute.xlu0 %872
        %v875 = vsel %vm729, %v726, 0
        %v878 = vsel %vm729, %v873, 0
        %880 = vmatprep.subr.bf16.mxu0 0
        %881 = vmatpush1.bf16.xpose.msra.mxu0 0
        %882 = vmatprep.subr.bf16.mxu0 0
        %883 = vmatpush1.bf16.xpose.msra.mxu0 0
        %884 = vmatprep.subr.bf16.mxu0 0
        %885 = vmatpush1.bf16.xpose.msra.mxu0 0
        %886 = vmatprep.subr.bf16.mxu0 0
        %887 = vmatpush1.bf16.xpose.msra.mxu0 0
        %888 = vmatprep.subr.bf16.mxu0 0
        %889 = vmatpush1.bf16.xpose.msra.mxu0 0
        %890 = vmatprep.subr.bf16.mxu0 0
        %891 = vmatpush1.bf16.xpose.msra.mxu0 0
        %892 = vmatprep.subr.bf16.mxu0 0
        %893 = vmatpush1.bf16.xpose.msra.mxu0 0
        %894 = vmatprep.subr.bf16.mxu0 0
        %895 = vmatpush1.bf16.xpose.msra.mxu0 %v878
        %896 = vmatprep.subr.bf16.mxu0 0
        %897 = vmatpush2.bf16.xpose.msra.mxu0 0
        %898 = vmatprep.subr.bf16.mxu0 0
        %899 = vmatpush2.bf16.xpose.msra.mxu0 0
        %900 = vmatprep.subr.bf16.mxu0 0
        %901 = vmatpush2.bf16.xpose.msra.mxu0 0
        %902 = vmatprep.subr.bf16.mxu0 0
        %903 = vmatpush2.bf16.xpose.msra.mxu0 0
        %904 = vmatprep.subr.bf16.mxu0 0
        %905 = vmatpush2.bf16.xpose.msra.mxu0 0
        %906 = vmatprep.subr.bf16.mxu0 0
        %907 = vmatpush2.bf16.xpose.msra.mxu0 0
        %908 = vmatprep.subr.bf16.mxu0 0
        %909 = vmatpush2.bf16.xpose.msra.mxu0 0
        %910 = vmatprep.subr.bf16.mxu0 0
        %911 = vmatpush2.bf16.xpose.msra.mxu0 0
        %912 = vmatprep.mubr.bf16.mxu0 0
        %913 = vmatmul.mubr.bf16.gmra.mxu0 %v875
        %v914 = vpop.f32.mrf.mxu0
        %v915 = vadd.f32 0.0, %v914
        %v916 = vpop.f32.mrf.mxu0
        %v917 = vpop.f32.mrf.mxu0
        %v918 = vpop.f32.mrf.mxu0
        %919 = vdwg.mxu0
        %v920 = vld [vmem:[%s520] sm:$0xf]
        %v921 = vunpack.c.l.bf16 %v920
        %v922 = vadd.f32 %v771, %v921
        %v923 = vadd.f32 %v819, %v921
        %v924 = vadd.f32 %v867, %v921
        %v925 = vadd.f32 %v915, %v921
        %v926 = vsel %vm729, %v922, -inf
        %927 = vmax.xlane.f32.xlu0 %v926
        %v928 = vpop.xlane.xlu0 %927
        %v929 = vsel %vm729, %v923, -inf
        %930 = vmax.xlane.f32.xlu0 %v929
        %v931 = vpop.xlane.xlu0 %930
        %v932 = vsel %vm729, %v924, -inf
        %933 = vmax.xlane.f32.xlu0 %v932
        %v934 = vpop.xlane.xlu0 %933
        %v935 = vsel %vm729, %v925, -inf
        %936 = vmax.xlane.f32.xlu0 %v935
        %v937 = vpop.xlane.xlu0 %936
        %v938 = vsub.f32 %v922, %v928
        %v939 = vsub.f32 %v923, %v931
        %v940 = vsub.f32 %v924, %v934
        %v941 = vsub.f32 %v925, %v937
        %v942 = vmul.f32 %v938, 1.442695
        %v943 = vpow.pop %v942
        %v944 = vmul.f32 %v939, 1.442695
        %v945 = vpow.pop %v944
        %v946 = vmul.f32 %v940, 1.442695
        %v947 = vpow.pop %v946
        %v948 = vmul.f32 %v941, 1.442695
        %v949 = vpow.pop %v948
        %v950 = vsel %vm729, %v943, 0.0
        %951 = vadd.xlane.f32.xlu0 %v950
        %v952 = vpop.xlane.xlu0 %951
        %v953 = vsel %vm729, %v945, 0.0
        %954 = vadd.xlane.f32.xlu0 %v953
        %v955 = vpop.xlane.xlu0 %954
        %v956 = vsel %vm729, %v947, 0.0
        %957 = vadd.xlane.f32.xlu0 %v956
        %v958 = vpop.xlane.xlu0 %957
        %v959 = vsel %vm729, %v949, 0.0
        %960 = vadd.xlane.f32.xlu0 %v959
        %v961 = vpop.xlane.xlu0 %960
        %v962 = vrcp.pop %v952
        %v963 = vrcp.pop %v955
        %v964 = vrcp.pop %v958
        %v965 = vrcp.pop %v961
        %v966 = vmul.f32 %v943, %v962
        %v967 = vmul.f32 %v945, %v963
        %v968 = vmul.f32 %v947, %v964
        %v969 = vmul.f32 %v949, %v965
        %v970 = vpack.c.bf16 %v966, %v966
        %v971 = vpack.c.bf16 %v967, %v967
        %v972 = vpack.c.bf16 %v968, %v968
        %v973 = vpack.c.bf16 %v969, %v969
        %974 = vrot.lane.b32.xlu0 %v719, 64
        %v975 = vpop.permute.xlu0 %974
        %v977 = vsel %vm729, %v970, 0
        %vm979 = vcmask 1043456
        %v981 = vsel %vm979, %v975, 0
        %983 = vmatprep.subr.bf16.mxu0 0
        %984 = vmatpush1.bf16.msra.mxu0 0
        %985 = vmatprep.subr.bf16.mxu0 0
        %986 = vmatpush1.bf16.msra.mxu0 0
        %987 = vmatprep.subr.bf16.mxu0 0
        %988 = vmatpush1.bf16.msra.mxu0 0
        %989 = vmatprep.subr.bf16.mxu0 0
        %990 = vmatpush1.bf16.msra.mxu0 0
        %991 = vmatprep.subr.bf16.mxu0 0
        %992 = vmatpush1.bf16.msra.mxu0 0
        %993 = vmatprep.subr.bf16.mxu0 0
        %994 = vmatpush1.bf16.msra.mxu0 0
        %995 = vmatprep.subr.bf16.mxu0 0
        %996 = vmatpush1.bf16.msra.mxu0 0
        %997 = vmatprep.subr.bf16.mxu0 0
        %998 = vmatpush1.bf16.msra.mxu0 %v981
        %999 = vmatprep.subr.bf16.mxu0 0
        %1000 = vmatpush2.bf16.msra.mxu0 0
        %1001 = vmatprep.subr.bf16.mxu0 0
        %1002 = vmatpush2.bf16.msra.mxu0 0
        %1003 = vmatprep.subr.bf16.mxu0 0
        %1004 = vmatpush2.bf16.msra.mxu0 0
        %1005 = vmatprep.subr.bf16.mxu0 0
        %1006 = vmatpush2.bf16.msra.mxu0 0
        %1007 = vmatprep.subr.bf16.mxu0 0
        %1008 = vmatpush2.bf16.msra.mxu0 0
        %1009 = vmatprep.subr.bf16.mxu0 0
        %1010 = vmatpush2.bf16.msra.mxu0 0
        %1011 = vmatprep.subr.bf16.mxu0 0
        %1012 = vmatpush2.bf16.msra.mxu0 0
        %1013 = vmatprep.subr.bf16.mxu0 0
        %1014 = vmatpush2.bf16.msra.mxu0 0
        %1015 = vmatprep.mubr.bf16.mxu0 0
        %1016 = vmatmul.mubr.bf16.gmra.mxu0 %v977
        %v1017 = vpop.f32.mrf.mxu0
        %v1018 = vadd.f32 0.0, %v1017
        %v1019 = vpop.f32.mrf.mxu0
        %v1020 = vpop.f32.mrf.mxu0
        %v1021 = vpop.f32.mrf.mxu0
        %1022 = vdwg.mxu0
        %1023 = vrot.lane.b32.xlu0 %v722, 64
        %v1024 = vpop.permute.xlu0 %1023
        %v1026 = vsel %vm729, %v971, 0
        %v1029 = vsel %vm979, %v1024, 0
        %1031 = vmatprep.subr.bf16.mxu0 0
        %1032 = vmatpush1.bf16.msra.mxu0 0
        %1033 = vmatprep.subr.bf16.mxu0 0
        %1034 = vmatpush1.bf16.msra.mxu0 0
        %1035 = vmatprep.subr.bf16.mxu0 0
        %1036 = vmatpush1.bf16.msra.mxu0 0
        %1037 = vmatprep.subr.bf16.mxu0 0
        %1038 = vmatpush1.bf16.msra.mxu0 0
        %1039 = vmatprep.subr.bf16.mxu0 0
        %1040 = vmatpush1.bf16.msra.mxu0 0
        %1041 = vmatprep.subr.bf16.mxu0 0
        %1042 = vmatpush1.bf16.msra.mxu0 0
        %1043 = vmatprep.subr.bf16.mxu0 0
        %1044 = vmatpush1.bf16.msra.mxu0 0
        %1045 = vmatprep.subr.bf16.mxu0 0
        %1046 = vmatpush1.bf16.msra.mxu0 %v1029
        %1047 = vmatprep.subr.bf16.mxu0 0
        %1048 = vmatpush2.bf16.msra.mxu0 0
        %1049 = vmatprep.subr.bf16.mxu0 0
        %1050 = vmatpush2.bf16.msra.mxu0 0
        %1051 = vmatprep.subr.bf16.mxu0 0
        %1052 = vmatpush2.bf16.msra.mxu0 0
        %1053 = vmatprep.subr.bf16.mxu0 0
        %1054 = vmatpush2.bf16.msra.mxu0 0
        %1055 = vmatprep.subr.bf16.mxu0 0
        %1056 = vmatpush2.bf16.msra.mxu0 0
        %1057 = vmatprep.subr.bf16.mxu0 0
        %1058 = vmatpush2.bf16.msra.mxu0 0
        %1059 = vmatprep.subr.bf16.mxu0 0
        %1060 = vmatpush2.bf16.msra.mxu0 0
        %1061 = vmatprep.subr.bf16.mxu0 0
        %1062 = vmatpush2.bf16.msra.mxu0 0
        %1063 = vmatprep.mubr.bf16.mxu0 0
        %1064 = vmatmul.mubr.bf16.gmra.mxu0 %v1026
        %v1065 = vpop.f32.mrf.mxu0
        %v1066 = vadd.f32 0.0, %v1065
        %v1067 = vpop.f32.mrf.mxu0
        %v1068 = vpop.f32.mrf.mxu0
        %v1069 = vpop.f32.mrf.mxu0
        %1070 = vdwg.mxu0
        %1071 = vrot.lane.b32.xlu0 %v724, 64
        %v1072 = vpop.permute.xlu0 %1071
        %v1074 = vsel %vm729, %v972, 0
        %v1077 = vsel %vm979, %v1072, 0
        %1079 = vmatprep.subr.bf16.mxu0 0
        %1080 = vmatpush1.bf16.msra.mxu0 0
        %1081 = vmatprep.subr.bf16.mxu0 0
        %1082 = vmatpush1.bf16.msra.mxu0 0
        %1083 = vmatprep.subr.bf16.mxu0 0
        %1084 = vmatpush1.bf16.msra.mxu0 0
        %1085 = vmatprep.subr.bf16.mxu0 0
        %1086 = vmatpush1.bf16.msra.mxu0 0
        %1087 = vmatprep.subr.bf16.mxu0 0
        %1088 = vmatpush1.bf16.msra.mxu0 0
        %1089 = vmatprep.subr.bf16.mxu0 0
        %1090 = vmatpush1.bf16.msra.mxu0 0
        %1091 = vmatprep.subr.bf16.mxu0 0
        %1092 = vmatpush1.bf16.msra.mxu0 0
        %1093 = vmatprep.subr.bf16.mxu0 0
        %1094 = vmatpush1.bf16.msra.mxu0 %v1077
        %1095 = vmatprep.subr.bf16.mxu0 0
        %1096 = vmatpush2.bf16.msra.mxu0 0
        %1097 = vmatprep.subr.bf16.mxu0 0
        %1098 = vmatpush2.bf16.msra.mxu0 0
        %1099 = vmatprep.subr.bf16.mxu0 0
        %1100 = vmatpush2.bf16.msra.mxu0 0
        %1101 = vmatprep.subr.bf16.mxu0 0
        %1102 = vmatpush2.bf16.msra.mxu0 0
        %1103 = vmatprep.subr.bf16.mxu0 0
        %1104 = vmatpush2.bf16.msra.mxu0 0
        %1105 = vmatprep.subr.bf16.mxu0 0
        %1106 = vmatpush2.bf16.msra.mxu0 0
        %1107 = vmatprep.subr.bf16.mxu0 0
        %1108 = vmatpush2.bf16.msra.mxu0 0
        %1109 = vmatprep.subr.bf16.mxu0 0
        %1110 = vmatpush2.bf16.msra.mxu0 0
        %1111 = vmatprep.mubr.bf16.mxu0 0
        %1112 = vmatmul.mubr.bf16.gmra.mxu0 %v1074
        %v1113 = vpop.f32.mrf.mxu0
        %v1114 = vadd.f32 0.0, %v1113
        %v1115 = vpop.f32.mrf.mxu0
        %v1116 = vpop.f32.mrf.mxu0
        %v1117 = vpop.f32.mrf.mxu0
        %1118 = vdwg.mxu0
        %1119 = vrot.lane.b32.xlu0 %v726, 64
        %v1120 = vpop.permute.xlu0 %1119
        %v1122 = vsel %vm729, %v973, 0
        %v1125 = vsel %vm979, %v1120, 0
        %1127 = vmatprep.subr.bf16.mxu0 0
        %1128 = vmatpush1.bf16.msra.mxu0 0
        %1129 = vmatprep.subr.bf16.mxu0 0
        %1130 = vmatpush1.bf16.msra.mxu0 0
        %1131 = vmatprep.subr.bf16.mxu0 0
        %1132 = vmatpush1.bf16.msra.mxu0 0
        %1133 = vmatprep.subr.bf16.mxu0 0
        %1134 = vmatpush1.bf16.msra.mxu0 0
        %1135 = vmatprep.subr.bf16.mxu0 0
        %1136 = vmatpush1.bf16.msra.mxu0 0
        %1137 = vmatprep.subr.bf16.mxu0 0
        %1138 = vmatpush1.bf16.msra.mxu0 0
        %1139 = vmatprep.subr.bf16.mxu0 0
        %1140 = vmatpush1.bf16.msra.mxu0 0
        %1141 = vmatprep.subr.bf16.mxu0 0
        %1142 = vmatpush1.bf16.msra.mxu0 %v1125
        %1143 = vmatprep.subr.bf16.mxu0 0
        %1144 = vmatpush2.bf16.msra.mxu0 0
        %1145 = vmatprep.subr.bf16.mxu0 0
        %1146 = vmatpush2.bf16.msra.mxu0 0
        %1147 = vmatprep.subr.bf16.mxu0 0
        %1148 = vmatpush2.bf16.msra.mxu0 0
        %1149 = vmatprep.subr.bf16.mxu0 0
        %1150 = vmatpush2.bf16.msra.mxu0 0
        %1151 = vmatprep.subr.bf16.mxu0 0
        %1152 = vmatpush2.bf16.msra.mxu0 0
        %1153 = vmatprep.subr.bf16.mxu0 0
        %1154 = vmatpush2.bf16.msra.mxu0 0
        %1155 = vmatprep.subr.bf16.mxu0 0
        %1156 = vmatpush2.bf16.msra.mxu0 0
        %1157 = vmatprep.subr.bf16.mxu0 0
        %1158 = vmatpush2.bf16.msra.mxu0 0
        %1159 = vmatprep.mubr.bf16.mxu0 0
        %1160 = vmatmul.mubr.bf16.gmra.mxu0 %v1122
        %v1161 = vpop.f32.mrf.mxu0
        %v1162 = vadd.f32 0.0, %v1161
        %v1163 = vpop.f32.mrf.mxu0
        %v1164 = vpop.f32.mrf.mxu0
        %v1165 = vpop.f32.mrf.mxu0
        %1166 = vdwg.mxu0
        %1168 = vrot.lane.b32.xlu0 %v1066, 8
        %v1169 = vpop.permute.xlu0 %1168
        %1172 = vrot.lane.b32.xlu0 %v1114, 16
        %v1173 = vpop.permute.xlu0 %1172
        %1176 = vrot.lane.b32.xlu0 %v1162, 24
        %v1177 = vpop.permute.xlu0 %1176
        %v1179 = vsel %vm729, %v1018, %v1169
        %vm1180 = vcmask 130048
        %v1181 = vsel %vm1180, %v1179, %v1173
        %vm1182 = vcmask 195584
        %v1183 = vsel %vm1182, %v1181, %v1177
        %v1184 = vpack.c.bf16 %v1183, %v1183
        %v1185 = vld [vmem:[%s616] sm:$0xf]
        %v1186 = vld [vmem:[%s616 + $0x4] sm:$0xf]
        %v1187 = vld [vmem:[%s616 + $0x8] sm:$0xf]
        %v1188 = vld [vmem:[%s616 + $0xc] sm:$0xf]
        %v1189 = vld [vmem:[%s619] sm:$0x1]
        %v1191 = vlaneseq
        %v1192 = vshrl.u32 %v1191, 7
        %v1193 = vsub.s32 0, %v1192
        %v1194 = vrot.slane %v1189, %v1193
        %v1200 = vunpack.c.l.b16 %v1185
        %v1201 = vunpack.c.l.b16 %v1186
        %v1202 = vunpack.c.l.b16 %v1187
        %v1203 = vunpack.c.l.b16 %v1188
        %v1204 = vpack.c.b16 %v1201, %v1200
        %v1205 = vpack.c.b16 %v1203, %v1202
        %v1209 = vsel %vm675, %v1184, 0
        %1211 = vmatprep.subr.bf16.mxu0 0
        %1212 = vmatpush1.bf16.msra.mxu0 0
        %1213 = vmatprep.subr.bf16.mxu0 0
        %1214 = vmatpush1.bf16.msra.mxu0 0
        %1215 = vmatprep.subr.bf16.mxu0 0
        %1216 = vmatpush1.bf16.msra.mxu0 0
        %1217 = vmatprep.subr.bf16.mxu0 0
        %1218 = vmatpush1.bf16.msra.mxu0 0
        %1219 = vmatprep.subr.bf16.mxu0 0
        %1220 = vmatpush1.bf16.msra.mxu0 0
        %1221 = vmatprep.subr.bf16.mxu0 0
        %1222 = vmatpush1.bf16.msra.mxu0 0
        %1223 = vmatprep.subr.bf16.mxu0 0
        %1224 = vmatpush1.bf16.msra.mxu0 %v1205
        %1225 = vmatprep.subr.bf16.mxu0 0
        %1226 = vmatpush1.bf16.msra.mxu0 %v1204
        %1227 = vmatprep.subr.bf16.mxu0 0
        %1228 = vmatpush2.bf16.msra.mxu0 0
        %1229 = vmatprep.subr.bf16.mxu0 0
        %1230 = vmatpush2.bf16.msra.mxu0 0
        %1231 = vmatprep.subr.bf16.mxu0 0
        %1232 = vmatpush2.bf16.msra.mxu0 0
        %1233 = vmatprep.subr.bf16.mxu0 0
        %1234 = vmatpush2.bf16.msra.mxu0 0
        %1235 = vmatprep.subr.bf16.mxu0 0
        %1236 = vmatpush2.bf16.msra.mxu0 0
        %1237 = vmatprep.subr.bf16.mxu0 0
        %1238 = vmatpush2.bf16.msra.mxu0 0
        %1239 = vmatprep.subr.bf16.mxu0 0
        %1240 = vmatpush2.bf16.msra.mxu0 0
        %1241 = vmatprep.subr.bf16.mxu0 0
        %1242 = vmatpush2.bf16.msra.mxu0 0
        %1243 = vmatprep.mubr.bf16.mxu0 0
        %1244 = vmatmul.mubr.bf16.gmra.mxu0 %v1209
        %v1245 = vpop.f32.mrf.mxu0
        %v1246 = vadd.f32 %v1194, %v1245
        %v1247 = vpop.f32.mrf.mxu0
        %v1248 = vpop.f32.mrf.mxu0
        %v1249 = vpop.f32.mrf.mxu0
        %1250 = vdwg.mxu0
        %v1251 = vpack.c.bf16 %v1246, %v1246
        %v1252 = vld [vmem:[%s624] sm:$0xf]
        %v1253 = vld [vmem:[%s624 + $0x4] sm:$0xf]
        %v1254 = vld [vmem:[%s624 + $0x8] sm:$0xf]
        %v1255 = vld [vmem:[%s624 + $0xc] sm:$0xf]
        %v1256 = vld [vmem:[%s627] sm:$0x1]
        %v1258 = vlaneseq
        %v1259 = vshrl.u32 %v1258, 7
        %v1260 = vsub.s32 0, %v1259
        %v1261 = vrot.slane %v1256, %v1260
        %v1267 = vunpack.c.l.b16 %v1252
        %v1268 = vunpack.c.l.b16 %v1253
        %v1269 = vunpack.c.l.b16 %v1254
        %v1270 = vunpack.c.l.b16 %v1255
        %v1271 = vpack.c.b16 %v1268, %v1267
        %v1272 = vpack.c.b16 %v1270, %v1269
        %v1276 = vsel %vm675, %v1251, 0
        %1278 = vmatprep.subr.bf16.mxu0 0
        %1279 = vmatpush1.bf16.msra.mxu0 0
        %1280 = vmatprep.subr.bf16.mxu0 0
        %1281 = vmatpush1.bf16.msra.mxu0 0
        %1282 = vmatprep.subr.bf16.mxu0 0
        %1283 = vmatpush1.bf16.msra.mxu0 0
        %1284 = vmatprep.subr.bf16.mxu0 0
        %1285 = vmatpush1.bf16.msra.mxu0 0
        %1286 = vmatprep.subr.bf16.mxu0 0
        %1287 = vmatpush1.bf16.msra.mxu0 0
        %1288 = vmatprep.subr.bf16.mxu0 0
        %1289 = vmatpush1.bf16.msra.mxu0 0
        %1290 = vmatprep.subr.bf16.mxu0 0
        %1291 = vmatpush1.bf16.msra.mxu0 %v1272
        %1292 = vmatprep.subr.bf16.mxu0 0
        %1293 = vmatpush1.bf16.msra.mxu0 %v1271
        %1294 = vmatprep.subr.bf16.mxu0 0
        %1295 = vmatpush2.bf16.msra.mxu0 0
        %1296 = vmatprep.subr.bf16.mxu0 0
        %1297 = vmatpush2.bf16.msra.mxu0 0
        %1298 = vmatprep.subr.bf16.mxu0 0
        %1299 = vmatpush2.bf16.msra.mxu0 0
        %1300 = vmatprep.subr.bf16.mxu0 0
        %1301 = vmatpush2.bf16.msra.mxu0 0
        %1302 = vmatprep.subr.bf16.mxu0 0
        %1303 = vmatpush2.bf16.msra.mxu0 0
        %1304 = vmatprep.subr.bf16.mxu0 0
        %1305 = vmatpush2.bf16.msra.mxu0 0
        %1306 = vmatprep.subr.bf16.mxu0 0
        %1307 = vmatpush2.bf16.msra.mxu0 0
        %1308 = vmatprep.subr.bf16.mxu0 0
        %1309 = vmatpush2.bf16.msra.mxu0 0
        %1310 = vmatprep.mubr.bf16.mxu0 0
        %1311 = vmatmul.mubr.bf16.gmra.mxu0 %v1276
        %v1312 = vpop.f32.mrf.mxu0
        %v1313 = vadd.f32 %v1261, %v1312
        %v1314 = vpop.f32.mrf.mxu0
        %v1315 = vpop.f32.mrf.mxu0
        %v1316 = vpop.f32.mrf.mxu0
        %1317 = vdwg.mxu0
        %v1318 = vmax.f32 %v1313, 0.0
        %v1319 = vpack.c.bf16 %v1318, %v1318
        %v1320 = vld [vmem:[%s632] sm:$0xf]
        %v1321 = vld [vmem:[%s632 + $0x4] sm:$0xf]
        %v1322 = vld [vmem:[%s632 + $0x8] sm:$0xf]
        %v1323 = vld [vmem:[%s632 + $0xc] sm:$0xf]
        %v1324 = vld [vmem:[%s632 + $0x10] sm:$0xf]
        %v1325 = vld [vmem:[%s632 + $0x14] sm:$0xf]
        %v1326 = vld [vmem:[%s632 + $0x18] sm:$0xf]
        %v1327 = vld [vmem:[%s632 + $0x1c] sm:$0xf]
        %v1328 = vld [vmem:[%s635] sm:$0x1]
        %v1330 = vlaneseq
        %v1331 = vshrl.u32 %v1330, 7
        %v1332 = vsub.s32 0, %v1331
        %v1333 = vrot.slane %v1328, %v1332
        %v1343 = vunpack.c.l.b16 %v1320
        %v1344 = vunpack.c.l.b16 %v1321
        %v1345 = vunpack.c.l.b16 %v1322
        %v1346 = vunpack.c.l.b16 %v1323
        %v1347 = vunpack.c.l.b16 %v1324
        %v1348 = vunpack.c.l.b16 %v1325
        %v1349 = vunpack.c.l.b16 %v1326
        %v1350 = vunpack.c.l.b16 %v1327
        %v1351 = vpack.c.b16 %v1344, %v1343
        %v1352 = vpack.c.b16 %v1346, %v1345
        %v1353 = vpack.c.b16 %v1348, %v1347
        %v1354 = vpack.c.b16 %v1350, %v1349
        %vm1359 = vcmask 523264
        %v1361 = vsel %vm1359, %v1319, 0
        %1363 = vmatprep.subr.bf16.mxu0 0
        %1364 = vmatpush1.bf16.msra.mxu0 0
        %1365 = vmatprep.subr.bf16.mxu0 0
        %1366 = vmatpush1.bf16.msra.mxu0 0
        %1367 = vmatprep.subr.bf16.mxu0 0
        %1368 = vmatpush1.bf16.msra.mxu0 0
        %1369 = vmatprep.subr.bf16.mxu0 0
        %1370 = vmatpush1.bf16.msra.mxu0 0
        %1371 = vmatprep.subr.bf16.mxu0 0
        %1372 = vmatpush1.bf16.msra.mxu0 %v1354
        %1373 = vmatprep.subr.bf16.mxu0 0
        %1374 = vmatpush1.bf16.msra.mxu0 %v1353
        %1375 = vmatprep.subr.bf16.mxu0 0
        %1376 = vmatpush1.bf16.msra.mxu0 %v1352
        %1377 = vmatprep.subr.bf16.mxu0 0
        %1378 = vmatpush1.bf16.msra.mxu0 %v1351
        %1379 = vmatprep.subr.bf16.mxu0 0
        %1380 = vmatpush2.bf16.msra.mxu0 0
        %1381 = vmatprep.subr.bf16.mxu0 0
        %1382 = vmatpush2.bf16.msra.mxu0 0
        %1383 = vmatprep.subr.bf16.mxu0 0
        %1384 = vmatpush2.bf16.msra.mxu0 0
        %1385 = vmatprep.subr.bf16.mxu0 0
        %1386 = vmatpush2.bf16.msra.mxu0 0
        %1387 = vmatprep.subr.bf16.mxu0 0
        %1388 = vmatpush2.bf16.msra.mxu0 0
        %1389 = vmatprep.subr.bf16.mxu0 0
        %1390 = vmatpush2.bf16.msra.mxu0 0
        %1391 = vmatprep.subr.bf16.mxu0 0
        %1392 = vmatpush2.bf16.msra.mxu0 0
        %1393 = vmatprep.subr.bf16.mxu0 0
        %1394 = vmatpush2.bf16.msra.mxu0 0
        %1395 = vmatprep.mubr.bf16.mxu0 0
        %1396 = vmatmul.mubr.bf16.gmra.mxu0 %v1361
        %v1397 = vpop.f32.mrf.mxu0
        %v1398 = vadd.f32 %v1333, %v1397
        %v1399 = vpop.f32.mrf.mxu0
        %v1400 = vpop.f32.mrf.mxu0
        %v1401 = vpop.f32.mrf.mxu0
        %1402 = vdwg.mxu0
        %v1403 = vadd.f32 %v1398, %v650
        %v1404 = vsel %vm675, %v1403, 0.0
        %1405 = vadd.xlane.f32.xlu0 %v1404
        %v1406 = vpop.xlane.xlu0 %1405
        %v1407 = vrcp.pop 32.0
        %v1408 = vmul.f32 %v1406, %v1407
        %v1409 = vsub.f32 %v1403, %v1408
        %v1410 = vmul.f32 %v1409, %v1409
        %v1411 = vsel %vm675, %v1410, 0.0
        %1412 = vadd.xlane.f32.xlu0 %v1411
        %v1413 = vpop.xlane.xlu0 %1412
        %v1414 = vmul.f32 %v1413, %v1407
        %v1415 = vld [vmem:[%s638] sm:$0x1]
        %v1416 = vadd.f32 %v1414, 1e-12
        %v1417 = vrsqrt.pop %v1416
        %v1418 = vmul.f32 %v1409, %v1417
        %v1420 = vlaneseq
        %v1421 = vshrl.u32 %v1420, 7
        %v1422 = vsub.s32 0, %v1421
        %v1423 = vrot.slane %v1415, %v1422
        %v1425 = vmul.f32 %v1423, %v1418
        %v1426 = vld [vmem:[%s641] sm:$0x1]
        %v1428 = vlaneseq
        %v1429 = vshrl.u32 %v1428, 7
        %v1430 = vsub.s32 0, %v1429
        %v1431 = vrot.slane %v1426, %v1430
        %v1433 = vadd.f32 %v1425, %v1431
        %1434 = vst.msk [vmem:[#allocation2] sm:$0xff] %vm675, %v1433
        %p1435 = scmp.eq.s32.totalorder %s37, 1
        // Predicated region
        $region81: #{tpu_custom_call.1} parent=67 // pred_check
          %p1436 = pneg %p1435
        $region82: #{tpu_custom_call.1} parent=67 // pred_check_branch
          %1438 = sbr.rel (%p1436) target = $region84
        $region83: #{tpu_custom_call.1} parent=67 // pred_region
          %v1439 = vld [vmem:[%s511] sm:$0xff]
          %v1440 = vadd.f32 %v1433, %v1439
          %1441 = vst.msk [vmem:[%s603] sm:$0xff] %vm675, %v1440
        $region84: #{tpu_custom_call.1} parent=67 // pred_fallthru
          _
        %s1442 = sand.u32 %s364, 1
        %s1443 = scalar_lea.sflag [#allocation5], %s1442
        %s1444 = sand.u32 %s364, 1
        %s1445 = smul.addr %s1444, 8
        %s1446 = scalar_lea.vmem [#allocation8], %s1445
        // Predicated region
        $region85: #{tpu_custom_call.1} parent=67 // pred_check
          %p1447 = pneg %p374
        $region86: #{tpu_custom_call.1} parent=67 // pred_check_branch
          %1449 = sbr.rel (%p1447) target = $region88
        $region87: #{tpu_custom_call.1} parent=67 // pred_region
          %s1451 = ssub.s32 128, 128
          %1452 = vsyncadd %s1443, %s1451
          %s1453 = smul.addr %s36, 128
          %s1454 = scalar_lea.hbm %s12, %s1453
          %s1456 = sshll.u32 %s1446, 4
          %s1457 = int_to_ptr.vmem [resolvable:$true] %s1456
          %1459 = dma.vmem_to_hbm [thread:$0]  %s1457, 128, %s1454, %s1443
        $region88: #{tpu_custom_call.1} parent=67 // pred_fallthru
          _
      $region68: #{tpu_custom_call.1} parent=5 // pred_fallthru
        _
      %p1460 = scmp.le.s32.totalorder 2, %s27
      // Predicated region
      $region89: #{tpu_custom_call.1} parent=5 // pred_check
        %p1461 = pneg %p1460
      $region90: #{tpu_custom_call.1} parent=5 // pred_check_branch
        %1463 = sbr.rel (%p1461) target = $region92
      $region91: #{tpu_custom_call.1} parent=5 // pred_region
        %s1464 = ssub.s32 %s27, 2
        // Predicated region
        $region93: #{tpu_custom_call.1} parent=91 // pred_check
          %p1465 = pneg %p380
        $region94: #{tpu_custom_call.1} parent=91 // pred_check_branch
          %1467 = sbr.rel (%p1465) target = $region96
        $region95: #{tpu_custom_call.1} parent=91 // pred_region
          %s1468 = sand.u32 %s365, 1
          %s1469 = scalar_lea.sflag [#allocation5], %s1468
          %s1470 = sand.u32 %s365, 1
          %s1471 = smul.addr %s1470, 8
          %s1472 = scalar_lea.vmem [#allocation8], %s1471
          %1473 = dma.done %s1469, 128
        $region96: #{tpu_custom_call.1} parent=91 // pred_fallthru
          _
      $region92: #{tpu_custom_call.1} parent=5 // pred_fallthru
        _
    $region6: #{tpu_custom_call.1} parent=1 // loop_footer
      %s31 = sadd.s32 1, %s27
    $region7: #{tpu_custom_call.1} parent=1 // loop_footer_branch
      %26 = sbr.rel target = $region3
    $region8: #{tpu_custom_call.1} parent=1 // loop_exit
      _
    %1474 = vsyncpa [#allocation4], 1
    %s1475 = scalar_lea.sflag [#allocation4], 1
    %1476 = vsyncpa %s1475, 1
    %1477 = vsyncpa [#allocation7], 1
    %s1478 = scalar_lea.sflag [#allocation7], 1
    %1479 = vsyncpa %s1478, 1
    %1480 = vsyncpa [#allocation5], 1
    %s1481 = scalar_lea.sflag [#allocation5], 1
    %1482 = vsyncpa %s1481, 1

</llo_original>
